<compile_context>
chip_gen: v5e
topology: v5e:2x2
jax: 0.10.0
libtpu: 0.0.40
codegen_flags: <defaults>
</compile_context>

<pallas_src>
import functools

import jax
import jax.numpy as jnp
from jax.experimental import pallas as pl
from jax.experimental.pallas import tpu as pltpu

EPS = 1e-5  # torch BatchNorm default


def _round_up(x, m):
    return (x + m - 1) // m * m


def _choose_tiles(n, tm, tk):
    """Per-axis tile sizes + padded extents (rows: mult of 8, cols: mult of 128)."""
    tm_eff = max(8, min(_round_up(tm, 8), _round_up(n, 8)))
    n_mpad = _round_up(n, tm_eff)
    # v7x megacore: keep >= 2 blocks on the "parallel" row axis when possible.
    if n_mpad // tm_eff < 2 and n > 8:
        tm_eff = _round_up((n + 1) // 2, 8)
        n_mpad = _round_up(n, tm_eff)
    tk_eff = max(128, min(_round_up(tk, 128), _round_up(n, 128)))
    n_kpad = _round_up(n, tk_eff)
    return tm_eff, n_mpad, tk_eff, n_kpad


def _gcn_edge_weights(edge_index, n):
    """Self-loop augmented, symmetrically normalized edges: (dst, src, vals)."""
    src, dst = edge_index[0], edge_index[1]
    loops = jnp.arange(n, dtype=edge_index.dtype)
    src = jnp.concatenate([src, loops])
    dst = jnp.concatenate([dst, loops])
    deg = jnp.zeros((n,), jnp.float32).at[dst].add(1.0)
    dinv = jnp.where(deg > 0, jax.lax.rsqrt(deg), 0.0)
    vals = dinv[dst] * dinv[src]
    return dst, src, vals


def _build_a_hat(edge_index, n, n_rows, n_cols, dtype):
    """Dense GCN-normalized adjacency, scatter-built directly in `dtype`."""
    dst, src, vals = _gcn_edge_weights(edge_index, n)
    return (jnp.zeros((n_rows, n_cols), dtype)
            .at[dst, src].add(vals.astype(dtype)))


def bgcn_encoder_forward(x, edge_index, weight, bias, gamma, beta,
                         *, tm=512, tk=2048, matmul_dtype=jnp.bfloat16,
                         xw_resident_max_bytes=4 * 1024 * 1024):
    """x: [N, Fin] f32, edge_index: [2, E] i32. Returns [N, Fout] f32."""
    n, f_in = x.shape
    f_out = weight.shape[1]

    tm_eff, n_mpad, tk_eff, n_kpad = _choose_tiles(n, tm, tk)
    m_blocks = n_mpad // tm_eff
    k_blocks = n_kpad // tk_eff
    f_pad = _round_up(f_out, 128)          # lane-dense output width
    itemsize = jnp.dtype(matmul_dtype).itemsize

    # ---- plain-JAX glue: adjacency + once-per-call feature transform --------
    a_hat = _build_a_hat(edge_index, n, n_mpad, n_kpad, matmul_dtype)

    w_pad = jnp.zeros((f_in, f_pad), jnp.float32).at[:, :f_out].set(
        weight.astype(jnp.float32))
    x_pad = jnp.zeros((n_kpad, f_in), jnp.float32).at[:n, :].set(
        x.astype(jnp.float32))
    # XW = X @ W (tiny): the lane-dense RHS that the conv kernel streams.
    xw = jnp.dot(x_pad, w_pad, preferred_element_type=jnp.float32,
                 precision=jax.lax.Precision.HIGHEST).astype(matmul_dtype)

    b_pad = jnp.zeros((1, f_pad), jnp.float32).at[0, :f_out].set(
        bias.astype(jnp.float32))
    g_pad = jnp.zeros((f_pad,), jnp.float32).at[:f_out].set(
        gamma.astype(jnp.float32))
    be_pad = jnp.zeros((f_pad,), jnp.float32).at[:f_out].set(
        beta.astype(jnp.float32))

    xw_bytes = n_kpad * f_pad * itemsize
    xw_resident = xw_bytes <= xw_resident_max_bytes

    # ---------------- kernel 1: tiled conv + tanh + partial BN stats ---------
    def conv_tanh_kernel(a_ref, xw_ref, b_ref, h_ref, stats_ref, acc_ref):
        i = pl.program_id(0)
        k = pl.program_id(1)

        @pl.when(k == 0)
        def _():
            acc_ref[...] = jnp.zeros_like(acc_ref)

        if xw_resident:
            start = pl.multiple_of(k * tk_eff, tk_eff)
            xw_tile = xw_ref[pl.ds(start, tk_eff), :]
        else:
            xw_tile = xw_ref[...]

        # Lane-dense accumulation of A_hat @ (X @ W) over column tiles.
        acc_ref[...] += jnp.dot(a_ref[...], xw_tile,
                                preferred_element_type=jnp.float32)

        @pl.when(k == pl.num_programs(1) - 1)
        def _():
            c = jnp.tanh(b_ref[...])                        # [1, f_pad]
            h = jnp.tanh(acc_ref[...] + b_ref[...])         # [tm, f_pad]
            h_ref[...] = h
            # Bias-shifted, row-masked column sums via a ones-row MXU matmul
            # (padded rows excluded; shift reduces one-pass variance cancellation).
            hc = h - c
            rows = (jax.lax.broadcasted_iota(jnp.int32, (1, tm_eff), 1)
                    + i * tm_eff)
            valid = (rows < n).astype(jnp.float32)          # [1, tm]
            stats_ref[0, 0:1, :] = jnp.dot(valid, hc,
                                           preferred_element_type=jnp.float32)
            stats_ref[0, 1:2, :] = jnp.dot(valid, hc * hc,
                                           preferred_element_type=jnp.float32)

    if xw_resident:
        xw_spec = pl.BlockSpec((n_kpad, f_pad), lambda i, k: (0, 0))   # load once
    else:
        xw_spec = pl.BlockSpec((tk_eff, f_pad), lambda i, k: (k, 0))   # stream

    # VMEM budget: double-buffered A tiles + XW + H out + f32 accumulator.
    a_buf = 2 * tm_eff * tk_eff * itemsize
    xw_buf = xw_bytes if xw_resident else 2 * tk_eff * f_pad * itemsize
    h_buf = 2 * tm_eff * f_pad * 4
    acc_buf = tm_eff * f_pad * 4
    misc = 16 * f_pad * 4
    footprint = a_buf + xw_buf + h_buf + acc_buf + misc
    vmem_limit = max(32 * 1024 * 1024, int(1.5 * footprint) + (4 << 20))

    h_pad, stats = pl.pallas_call(
        conv_tanh_kernel,
        out_shape=(jax.ShapeDtypeStruct((n_mpad, f_pad), jnp.float32),
                   jax.ShapeDtypeStruct((m_blocks, 2, f_pad), jnp.float32)),
        grid_spec=pltpu.PrefetchScalarGridSpec(
            num_scalar_prefetch=0,
            grid=(m_blocks, k_blocks),
            in_specs=[
                pl.BlockSpec((tm_eff, tk_eff), lambda i, k: (i, k)),   # A_hat tile
                xw_spec,                                               # XW
                pl.BlockSpec((1, f_pad), lambda i, k: (0, 0)),         # bias
            ],
            out_specs=[
                pl.BlockSpec((tm_eff, f_pad), lambda i, k: (i, 0)),    # H
                pl.BlockSpec((1, 2, f_pad), lambda i, k: (i, 0, 0)),   # block stats
            ],
            scratch_shapes=[pltpu.VMEM((tm_eff, f_pad), jnp.float32)],
        ),
        compiler_params=pltpu.CompilerParams(
            dimension_semantics=("parallel", "arbitrary"),
            vmem_limit_bytes=vmem_limit),
    )(a_hat, xw, b_pad)

    # ---- tiny JAX glue: finalize training-mode BatchNorm statistics ---------
    inv_n = 1.0 / float(n)
    c = jnp.tanh(b_pad[0])                                   # the stats shift
    mean_shift = jnp.sum(stats[:, 0, :], axis=0) * inv_n
    var = jnp.maximum(jnp.sum(stats[:, 1, :], axis=0) * inv_n
                      - mean_shift * mean_shift, 0.0)        # biased variance
    mean = c + mean_shift
    inv_std = jax.lax.rsqrt(var + EPS)
    scale = (g_pad * inv_std).reshape(1, f_pad)
    shift = (be_pad - mean * g_pad * inv_std).reshape(1, f_pad)

    # ---------------- kernel 2: lane-dense BatchNorm affine (in place) -------
    def _bn_block_rows(n_rows, row_tile, target_rows=4096):
        blocks = n_rows // row_tile
        best = 1
        for d in range(1, blocks + 1):
            if blocks % d == 0 and d * row_tile <= target_rows:
                best = d
        return best * row_tile

    bm = _bn_block_rows(n_mpad, tm_eff)

    def bn_affine_kernel(h_ref, scale_ref, shift_ref, o_ref):
        o_ref[...] = h_ref[...] * scale_ref[...] + shift_ref[...]

    out_pad = pl.pallas_call(
        bn_affine_kernel,
        out_shape=jax.ShapeDtypeStruct((n_mpad, f_pad), jnp.float32),
        grid=(n_mpad // bm,),
        in_specs=[
            pl.BlockSpec((bm, f_pad), lambda i: (i, 0)),
            pl.BlockSpec((1, f_pad), lambda i: (0, 0)),
            pl.BlockSpec((1, f_pad), lambda i: (0, 0)),
        ],
        out_specs=pl.BlockSpec((bm, f_pad), lambda i: (i, 0)),
        input_output_aliases={0: 0},                     # write in place over H
        compiler_params=pltpu.CompilerParams(
            dimension_semantics=("parallel",)),
    )(h_pad, scale, shift)

    return out_pad[:n, :f_out]


def _reference(x, edge_index, weight, bias, gamma, beta,
               matmul_dtype=jnp.float32):
    """Precision-matched pure-JAX reference of the encoder forward."""
    n = x.shape[0]
    a_hat = _build_a_hat(edge_index, n, n, n, matmul_dtype)
    xw = jnp.dot(x.astype(jnp.float32), weight.astype(jnp.float32),
                 preferred_element_type=jnp.float32,
                 precision=jax.lax.Precision.HIGHEST).astype(matmul_dtype)
    h = jnp.tanh(
        jnp.dot(a_hat, xw, preferred_element_type=jnp.float32,
                precision=jax.lax.Precision.HIGHEST) + bias)
    mean = h.mean(0, keepdims=True)
    var = ((h - mean) ** 2).mean(0, keepdims=True)
    return (h - mean) * jax.lax.rsqrt(var + EPS) * gamma + beta


if __name__ == "__main__":
    key = jax.random.PRNGKey(0)
    n_nodes, in_channels, out_channels, n_edges = 300, 8, 32, 1200

    k_x, k_e, k_w, k_b, k_g, k_be = jax.random.split(key, 6)
    x = jax.random.normal(k_x, (n_nodes, in_channels), jnp.float32)
    edge_index = jax.random.randint(k_e, (2, n_edges), 0, n_nodes, jnp.int32)

    glorot = (6.0 / (in_channels + out_channels)) ** 0.5
    weight = jax.random.uniform(k_w, (in_channels, out_channels), jnp.float32,
                                -glorot, glorot)
    bias = 0.1 * jax.random.normal(k_b, (out_channels,), jnp.float32)
    gamma = jax.random.uniform(k_g, (out_channels,), jnp.float32, 0.5, 1.5)
    beta = 0.1 * jax.random.normal(k_be, (out_channels,), jnp.float32)

    fwd = jax.jit(bgcn_encoder_forward,
                  static_argnames=("tm", "tk", "matmul_dtype",
                                   "xw_resident_max_bytes"))

    # Production-style config: large A tiles, bf16 A_hat/XW, f32 accumulation.
    out_bf16 = fwd(x, edge_index, weight, bias, gamma, beta,
                   matmul_dtype=jnp.bfloat16)
    # Small tiles so the example also exercises a real multi-block reduction grid.
    out_bf16_small = fwd(x, edge_index, weight, bias, gamma, beta,
                         tm=128, tk=128, matmul_dtype=jnp.bfloat16)
    # f32 path: validation only (f32 MXU matmul is multi-pass emulation).
    out_f32 = fwd(x, edge_index, weight, bias, gamma, beta,
                  tm=128, tk=128, matmul_dtype=jnp.float32)
    out_bf16, out_bf16_small, out_f32 = jax.block_until_ready(
        (out_bf16, out_bf16_small, out_f32))

    ref_f32 = _reference(x, edge_index, weight, bias, gamma, beta,
                         matmul_dtype=jnp.float32)
    ref_bf16 = _reference(x, edge_index, weight, bias, gamma, beta,
                          matmul_dtype=jnp.bfloat16)

    assert out_f32.shape == (n_nodes, out_channels)
    assert out_bf16.shape == (n_nodes, out_channels)
    # f32 kernel path vs full-precision reference: tight check of the math.
    assert jnp.allclose(out_f32, ref_f32, atol=1e-3, rtol=1e-3), \
        "f32 kernel mismatch vs reference"
    # bf16-input kernel paths vs precision-matched reference (f32 accumulation).
    assert jnp.allclose(out_bf16, ref_bf16, atol=5e-3, rtol=5e-3), \
        "bf16 kernel mismatch vs bf16 reference"
    assert jnp.allclose(out_bf16_small, ref_bf16, atol=5e-3, rtol=5e-3), \
        "bf16 (small-tile) kernel mismatch vs bf16 reference"

    print("KERNEL_OK")
</pallas_src>

<mosaic_0001>
module attributes {stable_mosaic.version = 11 : i64} {
  func.func @conv_tanh_kernel(%arg0: i32, %arg1: i32, %arg2: memref<152x384xbf16, #tpu.memory_space<vmem>>, %arg3: memref<384x128xbf16, #tpu.memory_space<vmem>>, %arg4: memref<1x128xf32, #tpu.memory_space<vmem>>, %arg5: memref<152x128xf32, #tpu.memory_space<vmem>>, %arg6: memref<1x2x128xf32, #tpu.memory_space<vmem>>, %arg7: memref<152x128xf32, #tpu.memory_space<vmem>>) attributes {dimension_semantics = [#tpu.dimension_semantics<parallel>, #tpu.dimension_semantics<arbitrary>], iteration_bounds = array<i64: 2, 1>, scalar_prefetch = 0 : i64, scratch_operands = 1 : i64, tpu.core_type = #tpu.core_type<tc>, window_params = [{transform_indices = @transform_0, window_bounds = array<i64: 152, 384>}, {pipeline_mode = #tpu.pipeline_mode<synchronous>, transform_indices = @transform_1, window_bounds = array<i64: 384, 128>}, {pipeline_mode = #tpu.pipeline_mode<synchronous>, transform_indices = @transform_2, window_bounds = array<i64: 1, 128>}, {transform_indices = @transform_3, window_bounds = array<i64: 152, 128>}, {transform_indices = @transform_4, window_bounds = array<i64: 1, 2, 128>}]} {
    %c0_i32 = arith.constant 0 : i32
    %0 = arith.cmpi eq, %arg1, %c0_i32 : i32
    %1 = arith.extui %0 : i1 to i32
    %c0_i32_0 = arith.constant 0 : i32
    %2 = arith.cmpi ne, %1, %c0_i32_0 : i32
    scf.if %2 {
      %cst_9 = arith.constant 0.000000e+00 : f32
      %15 = vector.broadcast %cst_9 : f32 to vector<152x128xf32>
      %c0_10 = arith.constant 0 : index
      %c0_11 = arith.constant 0 : index
      %16 = vector.load %arg7[%c0_10, %c0_11] : memref<152x128xf32, #tpu.memory_space<vmem>>, vector<152x128xf32>
      tpu.vector_store %arg7[%c0_10, %c0_11], %15 {strides = array<i32>} : memref<152x128xf32, #tpu.memory_space<vmem>>, vector<152x128xf32>,
    } else {
    }
    %c384_i32 = arith.constant 384 : i32
    %3 = arith.muli %arg1, %c384_i32 : i32
    %4 = tpu.assume_multiple %3, 384 : i32
    %5 = arith.index_cast %4 : i32 to index
    %c0 = arith.constant 0 : index
    %6 = vector.load %arg3[%5, %c0] : memref<384x128xbf16, #tpu.memory_space<vmem>>, vector<384x128xbf16>
    %c0_1 = arith.constant 0 : index
    %c0_2 = arith.constant 0 : index
    %7 = vector.load %arg7[%c0_1, %c0_2] : memref<152x128xf32, #tpu.memory_space<vmem>>, vector<152x128xf32>
    %c0_3 = arith.constant 0 : index
    %c0_4 = arith.constant 0 : index
    %8 = vector.load %arg2[%c0_3, %c0_4] : memref<152x384xbf16, #tpu.memory_space<vmem>>, vector<152x384xbf16>
    %cst = arith.constant dense<0.000000e+00> : vector<152x128xf32>
    %9 = tpu.matmul %8, %6, %cst {dimension_numbers = #tpu.dot_dimension_numbers<[1], [0], [0], [1], [0, 0, 1, 1], [], []>} : vector<152x384xbf16>, vector<384x128xbf16>, vector<152x128xf32> -> vector<152x128xf32>
    %10 = arith.addf %7, %9 : vector<152x128xf32>
    %c0_5 = arith.constant 0 : index
    %c0_6 = arith.constant 0 : index
    %11 = vector.load %arg7[%c0_5, %c0_6] : memref<152x128xf32, #tpu.memory_space<vmem>>, vector<152x128xf32>
    tpu.vector_store %arg7[%c0_5, %c0_6], %10 {strides = array<i32>} : memref<152x128xf32, #tpu.memory_space<vmem>>, vector<152x128xf32>,
    %c0_i32_7 = arith.constant 0 : i32
    %12 = arith.cmpi eq, %arg1, %c0_i32_7 : i32
    %13 = arith.extui %12 : i1 to i32
    %c0_i32_8 = arith.constant 0 : i32
    %14 = arith.cmpi ne, %13, %c0_i32_8 : i32
    scf.if %14 {
      %c0_9 = arith.constant 0 : index
      %c0_10 = arith.constant 0 : index
      %15 = vector.load %arg4[%c0_9, %c0_10] : memref<1x128xf32, #tpu.memory_space<vmem>>, vector<1x128xf32>
      %16 = math.tanh %15 : vector<1x128xf32>
      %c0_11 = arith.constant 0 : index
      %c0_12 = arith.constant 0 : index
      %17 = vector.load %arg7[%c0_11, %c0_12] : memref<152x128xf32, #tpu.memory_space<vmem>>, vector<152x128xf32>
      %c0_13 = arith.constant 0 : index
      %c0_14 = arith.constant 0 : index
      %18 = vector.load %arg4[%c0_13, %c0_14] : memref<1x128xf32, #tpu.memory_space<vmem>>, vector<1x128xf32>
      %19 = vector.broadcast %18 : vector<1x128xf32> to vector<152x128xf32>
      %20 = arith.addf %17, %19 : vector<152x128xf32>
      %21 = math.tanh %20 : vector<152x128xf32>
      %c0_15 = arith.constant 0 : index
      %c0_16 = arith.constant 0 : index
      %22 = vector.load %arg5[%c0_15, %c0_16] : memref<152x128xf32, #tpu.memory_space<vmem>>, vector<152x128xf32>
      tpu.vector_store %arg5[%c0_15, %c0_16], %21 {strides = array<i32>} : memref<152x128xf32, #tpu.memory_space<vmem>>, vector<152x128xf32>,
      %23 = vector.broadcast %16 : vector<1x128xf32> to vector<152x128xf32>
      %24 = arith.subf %21, %23 : vector<152x128xf32>
      %25 = tpu.iota {dimensions = array<i32: 1>} : vector<1x152xi32>
      %c152_i32 = arith.constant 152 : i32
      %26 = arith.muli %arg0, %c152_i32 : i32
      %27 = vector.broadcast %26 : i32 to vector<1x152xi32>
      %28 = arith.addi %25, %27 : vector<1x152xi32>
      %c300_i32 = arith.constant 300 : i32
      %29 = vector.broadcast %c300_i32 : i32 to vector<1x152xi32>
      %30 = arith.cmpi slt, %28, %29 : vector<1x152xi32>
      %31 = arith.extui %30 : vector<1x152xi1> to vector<1x152xi32>
      %32 = arith.sitofp %31 : vector<1x152xi32> to vector<1x152xf32>
      %cst_17 = arith.constant dense<0.000000e+00> : vector<1x128xf32>
      %33 = tpu.matmul %32, %24, %cst_17 {dimension_numbers = #tpu.dot_dimension_numbers<[1], [0], [0], [1], [0, 0, 1, 1], [], []>} : vector<1x152xf32>, vector<152x128xf32>, vector<1x128xf32> -> vector<1x128xf32>
      %c0_18 = arith.constant 0 : index
      %c0_19 = arith.constant 0 : index
      %c0_20 = arith.constant 0 : index
      %34 = vector.load %arg6[%c0_18, %c0_19, %c0_20] : memref<1x2x128xf32, #tpu.memory_space<vmem>>, vector<1x1x128xf32>
      %35 = vector.shape_cast %34 : vector<1x1x128xf32> to vector<1x128xf32>
      %36 = vector.shape_cast %33 : vector<1x128xf32> to vector<1x1x128xf32>
      tpu.vector_store %arg6[%c0_18, %c0_19, %c0_20], %36 {strides = array<i32>} : memref<1x2x128xf32, #tpu.memory_space<vmem>>, vector<1x1x128xf32>,
      %37 = arith.mulf %24, %24 : vector<152x128xf32>
      %cst_21 = arith.constant dense<0.000000e+00> : vector<1x128xf32>
      %38 = tpu.matmul %32, %37, %cst_21 {dimension_numbers = #tpu.dot_dimension_numbers<[1], [0], [0], [1], [0, 0, 1, 1], [], []>} : vector<1x152xf32>, vector<152x128xf32>, vector<1x128xf32> -> vector<1x128xf32>
      %c0_22 = arith.constant 0 : index
      %c1 = arith.constant 1 : index
      %c0_23 = arith.constant 0 : index
      %39 = vector.load %arg6[%c0_22, %c1, %c0_23] : memref<1x2x128xf32, #tpu.memory_space<vmem>>, vector<1x1x128xf32>
      %40 = vector.shape_cast %39 : vector<1x1x128xf32> to vector<1x128xf32>
      %41 = vector.shape_cast %38 : vector<1x128xf32> to vector<1x1x128xf32>
      tpu.vector_store %arg6[%c0_22, %c1, %c0_23], %41 {strides = array<i32>} : memref<1x2x128xf32, #tpu.memory_space<vmem>>, vector<1x1x128xf32>,
    } else {
    }
    return
  }
  func.func @transform_0(%arg0: i32, %arg1: i32) -> (i32, i32) {
    %c0_i32 = arith.constant 0 : i32
    return %arg0, %arg1 : i32, i32
  }
  func.func @transform_1(%arg0: i32, %arg1: i32) -> (i32, i32) {
    %c0_i32 = arith.constant 0 : i32
    %c0_i32_0 = arith.constant 0 : i32
    %c0_i32_1 = arith.constant 0 : i32
    return %c0_i32, %c0_i32_0 : i32, i32
  }
  func.func @transform_2(%arg0: i32, %arg1: i32) -> (i32, i32) {
    %c0_i32 = arith.constant 0 : i32
    %c0_i32_0 = arith.constant 0 : i32
    %c0_i32_1 = arith.constant 0 : i32
    return %c0_i32, %c0_i32_0 : i32, i32
  }
  func.func @transform_3(%arg0: i32, %arg1: i32) -> (i32, i32) {
    %c0_i32 = arith.constant 0 : i32
    %c0_i32_0 = arith.constant 0 : i32
    return %arg0, %c0_i32 : i32, i32
  }
  func.func @transform_4(%arg0: i32, %arg1: i32) -> (i32, i32, i32) {
    %c0_i32 = arith.constant 0 : i32
    %c0_i32_0 = arith.constant 0 : i32
    %c0_i32_1 = arith.constant 0 : i32
    return %arg0, %c0_i32, %c0_i32_0 : i32, i32, i32
  }
}

module attributes {stable_mosaic.version = 11 : i64} {
  func.func @bn_affine_kernel(%arg0: i32, %arg1: memref<304x128xf32, #tpu.memory_space<vmem>>, %arg2: memref<1x128xf32, #tpu.memory_space<vmem>>, %arg3: memref<1x128xf32, #tpu.memory_space<vmem>>, %arg4: memref<304x128xf32, #tpu.memory_space<vmem>>) attributes {dimension_semantics = [#tpu.dimension_semantics<parallel>], iteration_bounds = array<i64: 1>, scalar_prefetch = 0 : i64, scratch_operands = 0 : i64, tpu.core_type = #tpu.core_type<tc>, window_params = [{transform_indices = @transform_0, window_bounds = array<i64: 304, 128>}, {pipeline_mode = #tpu.pipeline_mode<synchronous>, transform_indices = @transform_1, window_bounds = array<i64: 1, 128>}, {pipeline_mode = #tpu.pipeline_mode<synchronous>, transform_indices = @transform_2, window_bounds = array<i64: 1, 128>}, {transform_indices = @transform_3, window_bounds = array<i64: 304, 128>}]} {
    %c0 = arith.constant 0 : index
    %c0_0 = arith.constant 0 : index
    %0 = vector.load %arg1[%c0, %c0_0] : memref<304x128xf32, #tpu.memory_space<vmem>>, vector<304x128xf32>
    %c0_1 = arith.constant 0 : index
    %c0_2 = arith.constant 0 : index
    %1 = vector.load %arg2[%c0_1, %c0_2] : memref<1x128xf32, #tpu.memory_space<vmem>>, vector<1x128xf32>
    %2 = vector.broadcast %1 : vector<1x128xf32> to vector<304x128xf32>
    %3 = arith.mulf %0, %2 : vector<304x128xf32>
    %c0_3 = arith.constant 0 : index
    %c0_4 = arith.constant 0 : index
    %4 = vector.load %arg3[%c0_3, %c0_4] : memref<1x128xf32, #tpu.memory_space<vmem>>, vector<1x128xf32>
    %5 = vector.broadcast %4 : vector<1x128xf32> to vector<304x128xf32>
    %6 = arith.addf %3, %5 : vector<304x128xf32>
    %c0_5 = arith.constant 0 : index
    %c0_6 = arith.constant 0 : index
    %7 = vector.load %arg4[%c0_5, %c0_6] : memref<304x128xf32, #tpu.memory_space<vmem>>, vector<304x128xf32>
    tpu.vector_store %arg4[%c0_5, %c0_6], %6 {strides = array<i32>} : memref<304x128xf32, #tpu.memory_space<vmem>>, vector<304x128xf32>,
    return
  }
  func.func @transform_0(%arg0: i32) -> (i32, i32) {
    %c0_i32 = arith.constant 0 : i32
    %c0_i32_0 = arith.constant 0 : i32
    return %arg0, %c0_i32 : i32, i32
  }
  func.func @transform_1(%arg0: i32) -> (i32, i32) {
    %c0_i32 = arith.constant 0 : i32
    %c0_i32_0 = arith.constant 0 : i32
    %c0_i32_1 = arith.constant 0 : i32
    return %c0_i32, %c0_i32_0 : i32, i32
  }
  func.func @transform_2(%arg0: i32) -> (i32, i32) {
    %c0_i32 = arith.constant 0 : i32
    %c0_i32_0 = arith.constant 0 : i32
    %c0_i32_1 = arith.constant 0 : i32
    return %c0_i32, %c0_i32_0 : i32, i32
  }
  func.func @transform_3(%arg0: i32) -> (i32, i32) {
    %c0_i32 = arith.constant 0 : i32
    %c0_i32_0 = arith.constant 0 : i32
    return %arg0, %c0_i32 : i32, i32
  }
}

</mosaic_0001>

<llo_original>
// kernel: bgcn_encoder_forward.2
$region0: #{bgcn_encoder_forward.2}
  #allocation0 [shape = 'u32[]', space=smem, size = 0x4, offset = 0x4, fixed_abs, tag = 'smem constant byte address 0x4 - core index']
  #allocation1 [shape = 'u32[72,128]{1,0:T(1,128)}', space=vmem, size = 0x9000, scoped, tag = 'internal scratch']
  #allocation2 [shape = 'f32[152,128]{1,0:T(8,128)}', space=vmem, size = 0x13000, scoped, tag = 'scratch operand']
  %s0 = inlined_call_operand.vmem [shape: bf16[304,384], index: 0, kind: input, shape index: {}]
  %s1 = inlined_call_operand.vmem [shape: bf16[384,128], index: 1, kind: input, shape index: {}]
  %s2 = inlined_call_operand.vmem [shape: f32[1,128], index: 2, kind: input, shape index: {}]
  %s3 = inlined_call_operand.vmem [shape: f32[304,128], index: 3, kind: output, shape index: {0}]
  %s4 = inlined_call_operand.vmem [shape: f32[2,2,128], index: 4, kind: output, shape index: {1}]
  %5 = xla_tuple %s3, %s4
  %s6 = sld [smem:[#allocation0]]
  $region61: #{bgcn_encoder_forward.2} parent=0
    _
  %s8 = ssub.s32 1, %s6
  %s9 = scalar_select 0, %s8, %s6
  loop: start=0, step=1, limit=4
  $region2: #{bgcn_encoder_forward.2} parent=0 // loop_pre_header
    _
  $region3: #{bgcn_encoder_forward.2} parent=0 // loop_header
    %s11 = sphi 0, %s15
    %p12 = scmp.ge.s32.totalorder %s11, 4
    %s18 = sphi 0, %s30
    %s19 = sphi 0, %s26
    %s20 = sphi 0, %s18
    %s21 = sphi 0, %s19
    %s22 = sphi 0, %s20
    %s23 = sphi 0, %s21
    %s35 = sphi 0, %s37
    %s38 = sphi 0, %s35
    %s39 = sphi 0, %s38
    %s55 = sphi 0, %s39
    %s59 = sphi 0, %s59
    %s61 = sphi 0, %s59
    %s62 = sphi 0, %s61
    %s76 = sphi 0, %s62
    %s80 = sphi 0, %s80
    %s82 = sphi 0, %s80
    %s83 = sphi 0, %s82
    %s97 = sphi 0, %s83
    %s103 = sphi 0, %s105
    %s106 = sphi 0, %s103
    %s107 = sphi 0, %s106
    %s123 = sphi 0, %s107
    %s129 = sphi 0, %s131
    %s132 = sphi 0, %s129
    %s133 = sphi 0, %s132
    %s149 = sphi 0, %s133
  $region4: #{bgcn_encoder_forward.2} parent=0 // loop_header_branch
    %14 = sbr.rel (%p12) target = $region8
  $region5: #{bgcn_encoder_forward.2} parent=0 // loop_body
    %s16 = ssub.s32 %s11, 1
    %s17 = ssub.s32 %s11, 2
    %s24 = sadd.s32 1, %s19
    %p25 = scmp.ge.s32.totalorder %s24, 1
    %s26 = scalar_select %p25, 0, %s24
    %s27 = sadd.s32 1, %s18
    %s28 = scalar_select %p25, %s27, %s18
    %p29 = scmp.ge.s32.totalorder %s28, 2
    %s30 = scalar_select %p29, 0, %s28
    %s31 = ssub.s32 %s18, %s30
    %s32 = ssub.s32 %s19, %s26
    %s33 = sor.u32 %s31, %s32
    %p34 = scmp.eq.s32.totalorder %s33, 0
    %s36 = sadd.s32 %s35, 1
    %s37 = scalar_select %p34, %s35, %s36
    %p40 = pneg %p34
    %p41 = scmp.eq.s32.totalorder %s11, 1
    %p42 = por %p40, %p41
    %p43 = scmp.ne.s32.totalorder %s35, %s38
    %p44 = scmp.eq.s32.totalorder %s11, 0
    %p45 = por %p43, %p44
    %p46 = scmp.ne.s32.totalorder %s35, %s38
    %p47 = scmp.eq.s32.totalorder %s16, 1
    %p48 = por %p46, %p47
    %p49 = scmp.ne.s32.totalorder %s38, %s39
    %p50 = scmp.eq.s32.totalorder %s16, 0
    %p51 = por %p49, %p50
    %p52 = scmp.ne.s32.totalorder %s38, %s39
    %p53 = scmp.eq.s32.totalorder %s17, 1
    %p54 = por %p52, %p53
    %p56 = scmp.ne.s32.totalorder %s39, %s55
    %p57 = scmp.eq.s32.totalorder %s17, 0
    %p58 = por %p56, %p57
    %s60 = sadd.s32 %s59, 1
    %p63 = scmp.eq.s32.totalorder %s11, 1
    %p64 = scmp.ne.s32.totalorder %s59, %s61
    %p65 = scmp.eq.s32.totalorder %s11, 0
    %p66 = por %p64, %p65
    %p67 = scmp.ne.s32.totalorder %s59, %s61
    %p68 = scmp.eq.s32.totalorder %s16, 1
    %p69 = por %p67, %p68
    %p70 = scmp.ne.s32.totalorder %s61, %s62
    %p71 = scmp.eq.s32.totalorder %s16, 0
    %p72 = por %p70, %p71
    %p73 = scmp.ne.s32.totalorder %s61, %s62
    %p74 = scmp.eq.s32.totalorder %s17, 1
    %p75 = por %p73, %p74
    %p77 = scmp.ne.s32.totalorder %s62, %s76
    %p78 = scmp.eq.s32.totalorder %s17, 0
    %p79 = por %p77, %p78
    %s81 = sadd.s32 %s80, 1
    %p84 = scmp.eq.s32.totalorder %s11, 1
    %p85 = scmp.ne.s32.totalorder %s80, %s82
    %p86 = scmp.eq.s32.totalorder %s11, 0
    %p87 = por %p85, %p86
    %p88 = scmp.ne.s32.totalorder %s80, %s82
    %p89 = scmp.eq.s32.totalorder %s16, 1
    %p90 = por %p88, %p89
    %p91 = scmp.ne.s32.totalorder %s82, %s83
    %p92 = scmp.eq.s32.totalorder %s16, 0
    %p93 = por %p91, %p92
    %p94 = scmp.ne.s32.totalorder %s82, %s83
    %p95 = scmp.eq.s32.totalorder %s17, 1
    %p96 = por %p94, %p95
    %p98 = scmp.ne.s32.totalorder %s83, %s97
    %p99 = scmp.eq.s32.totalorder %s17, 0
    %p100 = por %p98, %p99
    %s101 = ssub.s32 %s18, %s30
    %p102 = scmp.eq.s32.totalorder %s101, 0
    %s104 = sadd.s32 %s103, 1
    %s105 = scalar_select %p102, %s103, %s104
    %p108 = pneg %p102
    %p109 = scmp.eq.s32.totalorder %s11, 1
    %p110 = por %p108, %p109
    %p111 = scmp.ne.s32.totalorder %s103, %s106
    %p112 = scmp.eq.s32.totalorder %s11, 0
    %p113 = por %p111, %p112
    %p114 = scmp.ne.s32.totalorder %s103, %s106
    %p115 = scmp.eq.s32.totalorder %s16, 1
    %p116 = por %p114, %p115
    %p117 = scmp.ne.s32.totalorder %s106, %s107
    %p118 = scmp.eq.s32.totalorder %s16, 0
    %p119 = por %p117, %p118
    %p120 = scmp.ne.s32.totalorder %s106, %s107
    %p121 = scmp.eq.s32.totalorder %s17, 1
    %p122 = por %p120, %p121
    %p124 = scmp.ne.s32.totalorder %s107, %s123
    %p125 = scmp.eq.s32.totalorder %s17, 0
    %p126 = por %p124, %p125
    %s127 = ssub.s32 %s18, %s30
    %p128 = scmp.eq.s32.totalorder %s127, 0
    %s130 = sadd.s32 %s129, 1
    %s131 = scalar_select %p128, %s129, %s130
    %p134 = pneg %p128
    %p135 = scmp.eq.s32.totalorder %s11, 1
    %p136 = por %p134, %p135
    %p137 = scmp.ne.s32.totalorder %s129, %s132
    %p138 = scmp.eq.s32.totalorder %s11, 0
    %p139 = por %p137, %p138
    %p140 = scmp.ne.s32.totalorder %s129, %s132
    %p141 = scmp.eq.s32.totalorder %s16, 1
    %p142 = por %p140, %p141
    %p143 = scmp.ne.s32.totalorder %s132, %s133
    %p144 = scmp.eq.s32.totalorder %s16, 0
    %p145 = por %p143, %p144
    %p146 = scmp.ne.s32.totalorder %s132, %s133
    %p147 = scmp.eq.s32.totalorder %s17, 1
    %p148 = por %p146, %p147
    %p150 = scmp.ne.s32.totalorder %s133, %s149
    %p151 = scmp.eq.s32.totalorder %s17, 0
    %p152 = por %p150, %p151
    %p153 = scmp.le.s32.totalorder 1, %s11
    %p154 = scmp.lt.s32.totalorder %s11, 3
    %p155 = pnand %p153, %p154
    %p156 = pneg %p155
    // Predicated region
    $region9: #{bgcn_encoder_forward.2} parent=5 // pred_check
      _
    $region10: #{bgcn_encoder_forward.2} parent=5 // pred_check_branch
      %158 = sbr.rel (%p155) target = $region12
    $region11: #{bgcn_encoder_forward.2} parent=5 // pred_region
      %s159 = ssub.s32 %s11, 1
      // Predicated region
      $region13: #{bgcn_encoder_forward.2} parent=11 // pred_check
        %p160 = pneg %p72
      $region14: #{bgcn_encoder_forward.2} parent=11 // pred_check_branch
        %162 = sbr.rel (%p160) target = $region16
      $region15: #{bgcn_encoder_forward.2} parent=11 // pred_region
        _
      $region16: #{bgcn_encoder_forward.2} parent=11 // pred_fallthru
        _
      // Predicated region
      $region17: #{bgcn_encoder_forward.2} parent=11 // pred_check
        %p163 = pneg %p93
      $region18: #{bgcn_encoder_forward.2} parent=11 // pred_check_branch
        %165 = sbr.rel (%p163) target = $region20
      $region19: #{bgcn_encoder_forward.2} parent=11 // pred_region
        _
      $region20: #{bgcn_encoder_forward.2} parent=11 // pred_fallthru
        _
    $region12: #{bgcn_encoder_forward.2} parent=5 // pred_fallthru
      _
    %p166 = scmp.lt.s32.totalorder %s11, 2
    // Predicated region
    $region21: #{bgcn_encoder_forward.2} parent=5 // pred_check
      %p167 = pneg %p166
    $region22: #{bgcn_encoder_forward.2} parent=5 // pred_check_branch
      %169 = sbr.rel (%p167) target = $region24
    $region23: #{bgcn_encoder_forward.2} parent=5 // pred_region
      // Predicated region
      $region25: #{bgcn_encoder_forward.2} parent=23 // pred_check
        %p170 = pneg %p45
      $region26: #{bgcn_encoder_forward.2} parent=23 // pred_check_branch
        %172 = sbr.rel (%p170) target = $region28
      $region27: #{bgcn_encoder_forward.2} parent=23 // pred_region
        %s173 = smul.u32 19, %s18
        %s174 = smul.u32 3, %s19
        %p175 = scmp.lt.s32.totalorder %s173, 37
        %s176 = scalar_select %p175, %s173, 37
        %p177 = scmp.lt.s32.totalorder %s174, 2
        %s178 = scalar_select %p177, %s174, 2
        %s179 = smul.addr %s176, 3
        %s180 = sadd.s32 %s178, %s179
        %s181 = smul.addr %s180, 4
        %s182 = scalar_lea.vmem %s0, %s181
        %s183 = smul.u32 19, %s18
        %s184 = smul.u32 3, %s19
      $region28: #{bgcn_encoder_forward.2} parent=23 // pred_fallthru
        _
    $region24: #{bgcn_encoder_forward.2} parent=5 // pred_fallthru
      _
    %p185 = scmp.le.s32.totalorder 1, %s11
    %p186 = scmp.lt.s32.totalorder %s11, 3
    %p187 = pnand %p185, %p186
    %p188 = pneg %p187
    // Predicated region
    $region29: #{bgcn_encoder_forward.2} parent=5 // pred_check
      _
    $region30: #{bgcn_encoder_forward.2} parent=5 // pred_check_branch
      %190 = sbr.rel (%p187) target = $region32
    $region31: #{bgcn_encoder_forward.2} parent=5 // pred_region
      %s191 = ssub.s32 %s11, 1
      %s192 = smul.u32 19, %s20
      %s193 = smul.u32 3, %s21
      %p194 = scmp.lt.s32.totalorder %s192, 37
      %s195 = scalar_select %p194, %s192, 37
      %p196 = scmp.lt.s32.totalorder %s193, 2
      %s197 = scalar_select %p196, %s193, 2
      %s198 = smul.addr %s195, 3
      %s199 = sadd.s32 %s197, %s198
      %s200 = smul.addr %s199, 4
      %s201 = scalar_lea.vmem %s0, %s200
      %p202 = pneg %p51
      %p203 = pneg %p48
      %p204 = pneg %p72
      %p205 = pneg %p69
      %p206 = pneg %p93
      %p207 = pneg %p90
      %p208 = pneg %p119
      %p209 = pneg %p116
      %s210 = smul.u32 19, %s20
      %p211 = scmp.lt.s32.totalorder %s210, 37
      %s212 = scalar_select %p211, %s210, 37
      %s213 = smul.addr %s212, 8
      %s214 = scalar_lea.vmem %s3, %s213
      %p215 = pneg %p145
      %p216 = pneg %p142
      %p217 = scmp.lt.s32.totalorder %s20, 1
      %s218 = scalar_select %p217, %s20, 1
      %s219 = smul.addr %s218, 2
      %s220 = scalar_lea.vmem %s4, %s219
      %s221 = smul.u32 19, %s20
      %s222 = smul.u32 3, %s21
      %p223 = scmp.lt.s32.totalorder %s221, 37
      %s224 = scalar_select %p223, %s221, 37
      %p225 = scmp.lt.s32.totalorder %s222, 2
      %s226 = scalar_select %p225, %s222, 2
      %s227 = smul.addr %s224, 3
      %s228 = sadd.s32 %s226, %s227
      %s229 = smul.addr %s228, 4
      %s230 = scalar_lea.vmem %s0, %s229
      %s231 = smul.u32 19, %s20
      %s232 = smul.u32 3, %s21
      %s233 = smul.u32 19, %s20
      %p234 = scmp.lt.s32.totalorder %s233, 37
      %s235 = scalar_select %p234, %s233, 37
      %s236 = smul.addr %s235, 8
      %s237 = scalar_lea.vmem %s3, %s236
      %s238 = smul.u32 19, %s20
      %p239 = scmp.lt.s32.totalorder %s20, 1
      %s240 = scalar_select %p239, %s20, 1
      %s241 = smul.addr %s240, 2
      %s242 = scalar_lea.vmem %s4, %s241
      %p243 = scmp.eq.s32.totalorder %s21, 0
      // Predicated region
      $region33: #{bgcn_encoder_forward.2} parent=31 // pred_check
        %p244 = pneg %p243
      $region34: #{bgcn_encoder_forward.2} parent=31 // pred_check_branch
        %246 = sbr.rel (%p244) target = $region36
      $region35: #{bgcn_encoder_forward.2} parent=31 // pred_region
        %247 = vst [vmem:[#allocation2] sm:$0xff] 0.0
        %248 = vst [vmem:[#allocation2 + $0x8] sm:$0xff] 0.0
        %249 = vst [vmem:[#allocation2 + $0x10] sm:$0xff] 0.0
        %250 = vst [vmem:[#allocation2 + $0x18] sm:$0xff] 0.0
        %251 = vst [vmem:[#allocation2 + $0x20] sm:$0xff] 0.0
        %252 = vst [vmem:[#allocation2 + $0x28] sm:$0xff] 0.0
        %253 = vst [vmem:[#allocation2 + $0x30] sm:$0xff] 0.0
        %254 = vst [vmem:[#allocation2 + $0x38] sm:$0xff] 0.0
        %255 = vst [vmem:[#allocation2 + $0x40] sm:$0xff] 0.0
        %256 = vst [vmem:[#allocation2 + $0x48] sm:$0xff] 0.0
        %257 = vst [vmem:[#allocation2 + $0x50] sm:$0xff] 0.0
        %258 = vst [vmem:[#allocation2 + $0x58] sm:$0xff] 0.0
        %259 = vst [vmem:[#allocation2 + $0x60] sm:$0xff] 0.0
        %260 = vst [vmem:[#allocation2 + $0x68] sm:$0xff] 0.0
        %261 = vst [vmem:[#allocation2 + $0x70] sm:$0xff] 0.0
        %262 = vst [vmem:[#allocation2 + $0x78] sm:$0xff] 0.0
        %263 = vst [vmem:[#allocation2 + $0x80] sm:$0xff] 0.0
        %264 = vst [vmem:[#allocation2 + $0x88] sm:$0xff] 0.0
        %265 = vst [vmem:[#allocation2 + $0x90] sm:$0xff] 0.0
      $region36: #{bgcn_encoder_forward.2} parent=31 // pred_fallthru
        _
      %s266 = smul.u32 %s21, 384
      %s267 = sshra.s32 %s266, 3
      %s268 = sand.u32 %s266, 7
      %s269 = smul.addr %s267, 4
      %s270 = scalar_lea.vmem %s1, %s269
      %v271 = vld [vmem:[%s270] sm:$0xf]
      %v272 = vld [vmem:[%s270 + $0x4] sm:$0xf]
      %v273 = vld [vmem:[%s270 + $0x8] sm:$0xf]
      %v274 = vld [vmem:[%s270 + $0xc] sm:$0xf]
      %v275 = vld [vmem:[%s270 + $0x10] sm:$0xf]
      %v276 = vld [vmem:[%s270 + $0x14] sm:$0xf]
      %v277 = vld [vmem:[%s270 + $0x18] sm:$0xf]
      %v278 = vld [vmem:[%s270 + $0x1c] sm:$0xf]
      %v279 = vld [vmem:[%s270 + $0x20] sm:$0xf]
      %v280 = vld [vmem:[%s270 + $0x24] sm:$0xf]
      %v281 = vld [vmem:[%s270 + $0x28] sm:$0xf]
      %v282 = vld [vmem:[%s270 + $0x2c] sm:$0xf]
      %v283 = vld [vmem:[%s270 + $0x30] sm:$0xf]
      %v284 = vld [vmem:[%s270 + $0x34] sm:$0xf]
      %v285 = vld [vmem:[%s270 + $0x38] sm:$0xf]
      %v286 = vld [vmem:[%s270 + $0x3c] sm:$0xf]
      %v287 = vld [vmem:[%s270 + $0x40] sm:$0xf]
      %v288 = vld [vmem:[%s270 + $0x44] sm:$0xf]
      %v289 = vld [vmem:[%s270 + $0x48] sm:$0xf]
      %v290 = vld [vmem:[%s270 + $0x4c] sm:$0xf]
      %v291 = vld [vmem:[%s270 + $0x50] sm:$0xf]
      %v292 = vld [vmem:[%s270 + $0x54] sm:$0xf]
      %v293 = vld [vmem:[%s270 + $0x58] sm:$0xf]
      %v294 = vld [vmem:[%s270 + $0x5c] sm:$0xf]
      %v295 = vld [vmem:[%s270 + $0x60] sm:$0xf]
      %v296 = vld [vmem:[%s270 + $0x64] sm:$0xf]
      %v297 = vld [vmem:[%s270 + $0x68] sm:$0xf]
      %v298 = vld [vmem:[%s270 + $0x6c] sm:$0xf]
      %v299 = vld [vmem:[%s270 + $0x70] sm:$0xf]
      %v300 = vld [vmem:[%s270 + $0x74] sm:$0xf]
      %v301 = vld [vmem:[%s270 + $0x78] sm:$0xf]
      %v302 = vld [vmem:[%s270 + $0x7c] sm:$0xf]
      %v303 = vld [vmem:[%s270 + $0x80] sm:$0xf]
      %v304 = vld [vmem:[%s270 + $0x84] sm:$0xf]
      %v305 = vld [vmem:[%s270 + $0x88] sm:$0xf]
      %v306 = vld [vmem:[%s270 + $0x8c] sm:$0xf]
      %v307 = vld [vmem:[%s270 + $0x90] sm:$0xf]
      %v308 = vld [vmem:[%s270 + $0x94] sm:$0xf]
      %v309 = vld [vmem:[%s270 + $0x98] sm:$0xf]
      %v310 = vld [vmem:[%s270 + $0x9c] sm:$0xf]
      %v311 = vld [vmem:[%s270 + $0xa0] sm:$0xf]
      %v312 = vld [vmem:[%s270 + $0xa4] sm:$0xf]
      %v313 = vld [vmem:[%s270 + $0xa8] sm:$0xf]
      %v314 = vld [vmem:[%s270 + $0xac] sm:$0xf]
      %v315 = vld [vmem:[%s270 + $0xb0] sm:$0xf]
      %v316 = vld [vmem:[%s270 + $0xb4] sm:$0xf]
      %v317 = vld [vmem:[%s270 + $0xb8] sm:$0xf]
      %v318 = vld [vmem:[%s270 + $0xbc] sm:$0xf]
      %v319 = vld [vmem:[#allocation2] sm:$0xff]
      %v320 = vld [vmem:[#allocation2 + $0x8] sm:$0xff]
      %v321 = vld [vmem:[#allocation2 + $0x10] sm:$0xff]
      %v322 = vld [vmem:[#allocation2 + $0x18] sm:$0xff]
      %v323 = vld [vmem:[#allocation2 + $0x20] sm:$0xff]
      %v324 = vld [vmem:[#allocation2 + $0x28] sm:$0xff]
      %v325 = vld [vmem:[#allocation2 + $0x30] sm:$0xff]
      %v326 = vld [vmem:[#allocation2 + $0x38] sm:$0xff]
      %v327 = vld [vmem:[#allocation2 + $0x40] sm:$0xff]
      %v328 = vld [vmem:[#allocation2 + $0x48] sm:$0xff]
      %v329 = vld [vmem:[#allocation2 + $0x50] sm:$0xff]
      %v330 = vld [vmem:[#allocation2 + $0x58] sm:$0xff]
      %v331 = vld [vmem:[#allocation2 + $0x60] sm:$0xff]
      %v332 = vld [vmem:[#allocation2 + $0x68] sm:$0xff]
      %v333 = vld [vmem:[#allocation2 + $0x70] sm:$0xff]
      %v334 = vld [vmem:[#allocation2 + $0x78] sm:$0xff]
      %v335 = vld [vmem:[#allocation2 + $0x80] sm:$0xff]
      %v336 = vld [vmem:[#allocation2 + $0x88] sm:$0xff]
      %v337 = vld [vmem:[#allocation2 + $0x90] sm:$0xff]
      %v338 = vld [vmem:[%s230] sm:$0xff]
      %v339 = vld [vmem:[%s230 + $0x8] sm:$0xf]
      %v340 = vld [vmem:[%s230 + $0xc] sm:$0xff]
      %v341 = vld [vmem:[%s230 + $0x14] sm:$0xf]
      %v342 = vld [vmem:[%s230 + $0x18] sm:$0xff]
      %v343 = vld [vmem:[%s230 + $0x20] sm:$0xf]
      %v344 = vld [vmem:[%s230 + $0x24] sm:$0xff]
      %v345 = vld [vmem:[%s230 + $0x2c] sm:$0xf]
      %v346 = vld [vmem:[%s230 + $0x30] sm:$0xff]
      %v347 = vld [vmem:[%s230 + $0x38] sm:$0xf]
      %v348 = vld [vmem:[%s230 + $0x3c] sm:$0xff]
      %v349 = vld [vmem:[%s230 + $0x44] sm:$0xf]
      %v350 = vld [vmem:[%s230 + $0x48] sm:$0xff]
      %v351 = vld [vmem:[%s230 + $0x50] sm:$0xf]
      %v352 = vld [vmem:[%s230 + $0x54] sm:$0xff]
      %v353 = vld [vmem:[%s230 + $0x5c] sm:$0xf]
      %v354 = vld [vmem:[%s230 + $0x60] sm:$0xff]
      %v355 = vld [vmem:[%s230 + $0x68] sm:$0xf]
      %v356 = vld [vmem:[%s230 + $0x6c] sm:$0xff]
      %v357 = vld [vmem:[%s230 + $0x74] sm:$0xf]
      %v358 = vld [vmem:[%s230 + $0x78] sm:$0xff]
      %v359 = vld [vmem:[%s230 + $0x80] sm:$0xf]
      %v360 = vld [vmem:[%s230 + $0x84] sm:$0xff]
      %v361 = vld [vmem:[%s230 + $0x8c] sm:$0xf]
      %v362 = vld [vmem:[%s230 + $0x90] sm:$0xff]
      %v363 = vld [vmem:[%s230 + $0x98] sm:$0xf]
      %v364 = vld [vmem:[%s230 + $0x9c] sm:$0xff]
      %v365 = vld [vmem:[%s230 + $0xa4] sm:$0xf]
      %v366 = vld [vmem:[%s230 + $0xa8] sm:$0xff]
      %v367 = vld [vmem:[%s230 + $0xb0] sm:$0xf]
      %v368 = vld [vmem:[%s230 + $0xb4] sm:$0xff]
      %v369 = vld [vmem:[%s230 + $0xbc] sm:$0xf]
      %v370 = vld [vmem:[%s230 + $0xc0] sm:$0xff]
      %v371 = vld [vmem:[%s230 + $0xc8] sm:$0xf]
      %v372 = vld [vmem:[%s230 + $0xcc] sm:$0xff]
      %v373 = vld [vmem:[%s230 + $0xd4] sm:$0xf]
      %v374 = vld [vmem:[%s230 + $0xd8] sm:$0xff]
      %v375 = vld [vmem:[%s230 + $0xe0] sm:$0xf]
      %v414 = vunpack.c.l.b16 %v338
      %v415 = vunpack.c.h.b16 %v338
      %v416 = vunpack.c.l.b16 %v339
      %v417 = vunpack.c.l.b16 %v340
      %v418 = vunpack.c.h.b16 %v340
      %v419 = vunpack.c.l.b16 %v341
      %v420 = vunpack.c.l.b16 %v342
      %v421 = vunpack.c.h.b16 %v342
      %v422 = vunpack.c.l.b16 %v343
      %v423 = vunpack.c.l.b16 %v344
      %v424 = vunpack.c.h.b16 %v344
      %v425 = vunpack.c.l.b16 %v345
      %v426 = vunpack.c.l.b16 %v346
      %v427 = vunpack.c.h.b16 %v346
      %v428 = vunpack.c.l.b16 %v347
      %v429 = vunpack.c.l.b16 %v348
      %v430 = vunpack.c.h.b16 %v348
      %v431 = vunpack.c.l.b16 %v349
      %v432 = vunpack.c.l.b16 %v350
      %v433 = vunpack.c.h.b16 %v350
      %v434 = vunpack.c.l.b16 %v351
      %v435 = vunpack.c.l.b16 %v352
      %v436 = vunpack.c.h.b16 %v352
      %v437 = vunpack.c.l.b16 %v353
      %v438 = vunpack.c.l.b16 %v354
      %v439 = vunpack.c.h.b16 %v354
      %v440 = vunpack.c.l.b16 %v355
      %v441 = vunpack.c.l.b16 %v356
      %v442 = vunpack.c.h.b16 %v356
      %v443 = vunpack.c.l.b16 %v357
      %v444 = vunpack.c.l.b16 %v358
      %v445 = vunpack.c.h.b16 %v358
      %v446 = vunpack.c.l.b16 %v359
      %v447 = vunpack.c.l.b16 %v360
      %v448 = vunpack.c.h.b16 %v360
      %v449 = vunpack.c.l.b16 %v361
      %v450 = vunpack.c.l.b16 %v362
      %v451 = vunpack.c.h.b16 %v362
      %v452 = vunpack.c.l.b16 %v363
      %v453 = vunpack.c.l.b16 %v364
      %v454 = vunpack.c.h.b16 %v364
      %v455 = vunpack.c.l.b16 %v365
      %v456 = vunpack.c.l.b16 %v366
      %v457 = vunpack.c.h.b16 %v366
      %v458 = vunpack.c.l.b16 %v367
      %v459 = vunpack.c.l.b16 %v368
      %v460 = vunpack.c.h.b16 %v368
      %v461 = vunpack.c.l.b16 %v369
      %v462 = vunpack.c.l.b16 %v370
      %v463 = vunpack.c.h.b16 %v370
      %v464 = vunpack.c.l.b16 %v371
      %v465 = vunpack.c.l.b16 %v372
      %v466 = vunpack.c.h.b16 %v372
      %v467 = vunpack.c.l.b16 %v373
      %v468 = vunpack.c.l.b16 %v374
      %v469 = vunpack.c.h.b16 %v374
      %v470 = vunpack.c.l.b16 %v375
      %v471 = vpack.c.b16 %v417, %v414
      %v472 = vpack.c.b16 %v418, %v415
      %v473 = vpack.c.b16 %v419, %v416
      %v474 = vpack.c.b16 %v423, %v420
      %v475 = vpack.c.b16 %v424, %v421
      %v476 = vpack.c.b16 %v425, %v422
      %v477 = vpack.c.b16 %v429, %v426
      %v478 = vpack.c.b16 %v430, %v427
      %v479 = vpack.c.b16 %v431, %v428
      %v480 = vpack.c.b16 %v435, %v432
      %v481 = vpack.c.b16 %v436, %v433
      %v482 = vpack.c.b16 %v437, %v434
      %v483 = vpack.c.b16 %v441, %v438
      %v484 = vpack.c.b16 %v442, %v439
      %v485 = vpack.c.b16 %v443, %v440
      %v486 = vpack.c.b16 %v447, %v444
      %v487 = vpack.c.b16 %v448, %v445
      %v488 = vpack.c.b16 %v449, %v446
      %v489 = vpack.c.b16 %v453, %v450
      %v490 = vpack.c.b16 %v454, %v451
      %v491 = vpack.c.b16 %v455, %v452
      %v492 = vpack.c.b16 %v459, %v456
      %v493 = vpack.c.b16 %v460, %v457
      %v494 = vpack.c.b16 %v461, %v458
      %v495 = vpack.c.b16 %v465, %v462
      %v496 = vpack.c.b16 %v466, %v463
      %v497 = vpack.c.b16 %v467, %v464
      %v498 = vpack.c.b16 %v468, %v468
      %v499 = vpack.c.b16 %v469, %v469
      %v500 = vpack.c.b16 %v470, %v470
      %v579 = vunpack.c.l.b16 %v271
      %v580 = vunpack.c.l.b16 %v272
      %v581 = vunpack.c.l.b16 %v273
      %v582 = vunpack.c.l.b16 %v274
      %v583 = vunpack.c.l.b16 %v275
      %v584 = vunpack.c.l.b16 %v276
      %v585 = vunpack.c.l.b16 %v277
      %v586 = vunpack.c.l.b16 %v278
      %v587 = vunpack.c.l.b16 %v279
      %v588 = vunpack.c.l.b16 %v280
      %v589 = vunpack.c.l.b16 %v281
      %v590 = vunpack.c.l.b16 %v282
      %v591 = vunpack.c.l.b16 %v283
      %v592 = vunpack.c.l.b16 %v284
      %v593 = vunpack.c.l.b16 %v285
      %v594 = vunpack.c.l.b16 %v286
      %v595 = vunpack.c.l.b16 %v287
      %v596 = vunpack.c.l.b16 %v288
      %v597 = vunpack.c.l.b16 %v289
      %v598 = vunpack.c.l.b16 %v290
      %v599 = vunpack.c.l.b16 %v291
      %v600 = vunpack.c.l.b16 %v292
      %v601 = vunpack.c.l.b16 %v293
      %v602 = vunpack.c.l.b16 %v294
      %v603 = vunpack.c.l.b16 %v295
      %v604 = vunpack.c.l.b16 %v296
      %v605 = vunpack.c.l.b16 %v297
      %v606 = vunpack.c.l.b16 %v298
      %v607 = vunpack.c.l.b16 %v299
      %v608 = vunpack.c.l.b16 %v300
      %v609 = vunpack.c.l.b16 %v301
      %v610 = vunpack.c.l.b16 %v302
      %v611 = vunpack.c.l.b16 %v303
      %v612 = vunpack.c.l.b16 %v304
      %v613 = vunpack.c.l.b16 %v305
      %v614 = vunpack.c.l.b16 %v306
      %v615 = vunpack.c.l.b16 %v307
      %v616 = vunpack.c.l.b16 %v308
      %v617 = vunpack.c.l.b16 %v309
      %v618 = vunpack.c.l.b16 %v310
      %v619 = vunpack.c.l.b16 %v311
      %v620 = vunpack.c.l.b16 %v312
      %v621 = vunpack.c.l.b16 %v313
      %v622 = vunpack.c.l.b16 %v314
      %v623 = vunpack.c.l.b16 %v315
      %v624 = vunpack.c.l.b16 %v316
      %v625 = vunpack.c.l.b16 %v317
      %v626 = vunpack.c.l.b16 %v318
      %v627 = vpack.c.b16 %v580, %v579
      %v628 = vpack.c.b16 %v582, %v581
      %v629 = vpack.c.b16 %v584, %v583
      %v630 = vpack.c.b16 %v586, %v585
      %v631 = vpack.c.b16 %v588, %v587
      %v632 = vpack.c.b16 %v590, %v589
      %v633 = vpack.c.b16 %v592, %v591
      %v634 = vpack.c.b16 %v594, %v593
      %v635 = vpack.c.b16 %v596, %v595
      %v636 = vpack.c.b16 %v598, %v597
      %v637 = vpack.c.b16 %v600, %v599
      %v638 = vpack.c.b16 %v602, %v601
      %v639 = vpack.c.b16 %v604, %v603
      %v640 = vpack.c.b16 %v606, %v605
      %v641 = vpack.c.b16 %v608, %v607
      %v642 = vpack.c.b16 %v610, %v609
      %v643 = vpack.c.b16 %v612, %v611
      %v644 = vpack.c.b16 %v614, %v613
      %v645 = vpack.c.b16 %v616, %v615
      %v646 = vpack.c.b16 %v618, %v617
      %v647 = vpack.c.b16 %v620, %v619
      %v648 = vpack.c.b16 %v622, %v621
      %v649 = vpack.c.b16 %v624, %v623
      %v650 = vpack.c.b16 %v626, %v625
      %675 = vmatpush.bf16.msra.mxu0 %v634
      %676 = vmatpush.bf16.msra.mxu0 %v633
      %677 = vmatpush.bf16.msra.mxu0 %v632
      %678 = vmatpush.bf16.msra.mxu0 %v631
      %679 = vmatpush.bf16.msra.mxu0 %v630
      %680 = vmatpush.bf16.msra.mxu0 %v629
      %681 = vmatpush.bf16.msra.mxu0 %v628
      %682 = vmatpush.bf16.msra.mxu0 %v627
      %683 = vmatmul.bf16.gmra.mxu0 %v471
      %v684 = vpop.f32.mrf.mxu0
      %v685 = vadd.f32 0.0, %v684
      %v686 = vpop.f32.mrf.mxu0
      %v687 = vadd.f32 0.0, %v686
      %688 = vmatmul.bf16.gmra.mxu0 %v474
      %v689 = vpop.f32.mrf.mxu0
      %v690 = vadd.f32 0.0, %v689
      %v691 = vpop.f32.mrf.mxu0
      %v692 = vadd.f32 0.0, %v691
      %693 = vmatmul.bf16.gmra.mxu0 %v477
      %v694 = vpop.f32.mrf.mxu0
      %v695 = vadd.f32 0.0, %v694
      %v696 = vpop.f32.mrf.mxu0
      %v697 = vadd.f32 0.0, %v696
      %698 = vmatmul.bf16.gmra.mxu0 %v480
      %v699 = vpop.f32.mrf.mxu0
      %v700 = vadd.f32 0.0, %v699
      %v701 = vpop.f32.mrf.mxu0
      %v702 = vadd.f32 0.0, %v701
      %703 = vmatmul.bf16.gmra.mxu0 %v483
      %v704 = vpop.f32.mrf.mxu0
      %v705 = vadd.f32 0.0, %v704
      %v706 = vpop.f32.mrf.mxu0
      %v707 = vadd.f32 0.0, %v706
      %708 = vmatmul.bf16.gmra.mxu0 %v486
      %v709 = vpop.f32.mrf.mxu0
      %v710 = vadd.f32 0.0, %v709
      %v711 = vpop.f32.mrf.mxu0
      %v712 = vadd.f32 0.0, %v711
      %713 = vmatmul.bf16.gmra.mxu0 %v489
      %v714 = vpop.f32.mrf.mxu0
      %v715 = vadd.f32 0.0, %v714
      %v716 = vpop.f32.mrf.mxu0
      %v717 = vadd.f32 0.0, %v716
      %718 = vmatmul.bf16.gmra.mxu0 %v492
      %v719 = vpop.f32.mrf.mxu0
      %v720 = vadd.f32 0.0, %v719
      %v721 = vpop.f32.mrf.mxu0
      %v722 = vadd.f32 0.0, %v721
      %723 = vmatmul.bf16.gmra.mxu0 %v495
      %v724 = vpop.f32.mrf.mxu0
      %v725 = vadd.f32 0.0, %v724
      %v726 = vpop.f32.mrf.mxu0
      %v727 = vadd.f32 0.0, %v726
      %728 = vmatmul.bf16.gmra.mxu0 %v498
      %v729 = vpop.f32.mrf.mxu0
      %v730 = vadd.f32 0.0, %v729
      %v731 = vpop.f32.mrf.mxu0
      %732 = vdwg.mxu0
      %733 = vmatpush.bf16.msra.mxu0 %v642
      %734 = vmatpush.bf16.msra.mxu0 %v641
      %735 = vmatpush.bf16.msra.mxu0 %v640
      %736 = vmatpush.bf16.msra.mxu0 %v639
      %737 = vmatpush.bf16.msra.mxu0 %v638
      %738 = vmatpush.bf16.msra.mxu0 %v637
      %739 = vmatpush.bf16.msra.mxu0 %v636
      %740 = vmatpush.bf16.msra.mxu0 %v635
      %741 = vmatmul.bf16.gmra.mxu0 %v472
      %v742 = vpop.f32.mrf.mxu0
      %v743 = vadd.f32 %v685, %v742
      %v744 = vpop.f32.mrf.mxu0
      %v745 = vadd.f32 %v687, %v744
      %746 = vmatmul.bf16.gmra.mxu0 %v475
      %v747 = vpop.f32.mrf.mxu0
      %v748 = vadd.f32 %v690, %v747
      %v749 = vpop.f32.mrf.mxu0
      %v750 = vadd.f32 %v692, %v749
      %751 = vmatmul.bf16.gmra.mxu0 %v478
      %v752 = vpop.f32.mrf.mxu0
      %v753 = vadd.f32 %v695, %v752
      %v754 = vpop.f32.mrf.mxu0
      %v755 = vadd.f32 %v697, %v754
      %756 = vmatmul.bf16.gmra.mxu0 %v481
      %v757 = vpop.f32.mrf.mxu0
      %v758 = vadd.f32 %v700, %v757
      %v759 = vpop.f32.mrf.mxu0
      %v760 = vadd.f32 %v702, %v759
      %761 = vmatmul.bf16.gmra.mxu0 %v484
      %v762 = vpop.f32.mrf.mxu0
      %v763 = vadd.f32 %v705, %v762
      %v764 = vpop.f32.mrf.mxu0
      %v765 = vadd.f32 %v707, %v764
      %766 = vmatmul.bf16.gmra.mxu0 %v487
      %v767 = vpop.f32.mrf.mxu0
      %v768 = vadd.f32 %v710, %v767
      %v769 = vpop.f32.mrf.mxu0
      %v770 = vadd.f32 %v712, %v769
      %771 = vmatmul.bf16.gmra.mxu0 %v490
      %v772 = vpop.f32.mrf.mxu0
      %v773 = vadd.f32 %v715, %v772
      %v774 = vpop.f32.mrf.mxu0
      %v775 = vadd.f32 %v717, %v774
      %776 = vmatmul.bf16.gmra.mxu0 %v493
      %v777 = vpop.f32.mrf.mxu0
      %v778 = vadd.f32 %v720, %v777
      %v779 = vpop.f32.mrf.mxu0
      %v780 = vadd.f32 %v722, %v779
      %781 = vmatmul.bf16.gmra.mxu0 %v496
      %v782 = vpop.f32.mrf.mxu0
      %v783 = vadd.f32 %v725, %v782
      %v784 = vpop.f32.mrf.mxu0
      %v785 = vadd.f32 %v727, %v784
      %786 = vmatmul.bf16.gmra.mxu0 %v499
      %v787 = vpop.f32.mrf.mxu0
      %v788 = vadd.f32 %v730, %v787
      %v789 = vpop.f32.mrf.mxu0
      %790 = vdwg.mxu0
      %791 = vmatpush.bf16.msra.mxu0 %v650
      %792 = vmatpush.bf16.msra.mxu0 %v649
      %793 = vmatpush.bf16.msra.mxu0 %v648
      %794 = vmatpush.bf16.msra.mxu0 %v647
      %795 = vmatpush.bf16.msra.mxu0 %v646
      %796 = vmatpush.bf16.msra.mxu0 %v645
      %797 = vmatpush.bf16.msra.mxu0 %v644
      %798 = vmatpush.bf16.msra.mxu0 %v643
      %799 = vmatmul.bf16.gmra.mxu0 %v473
      %v800 = vpop.f32.mrf.mxu0
      %v801 = vadd.f32 %v743, %v800
      %v802 = vpop.f32.mrf.mxu0
      %v803 = vadd.f32 %v745, %v802
      %804 = vmatmul.bf16.gmra.mxu0 %v476
      %v805 = vpop.f32.mrf.mxu0
      %v806 = vadd.f32 %v748, %v805
      %v807 = vpop.f32.mrf.mxu0
      %v808 = vadd.f32 %v750, %v807
      %809 = vmatmul.bf16.gmra.mxu0 %v479
      %v810 = vpop.f32.mrf.mxu0
      %v811 = vadd.f32 %v753, %v810
      %v812 = vpop.f32.mrf.mxu0
      %v813 = vadd.f32 %v755, %v812
      %814 = vmatmul.bf16.gmra.mxu0 %v482
      %v815 = vpop.f32.mrf.mxu0
      %v816 = vadd.f32 %v758, %v815
      %v817 = vpop.f32.mrf.mxu0
      %v818 = vadd.f32 %v760, %v817
      %819 = vmatmul.bf16.gmra.mxu0 %v485
      %v820 = vpop.f32.mrf.mxu0
      %v821 = vadd.f32 %v763, %v820
      %v822 = vpop.f32.mrf.mxu0
      %v823 = vadd.f32 %v765, %v822
      %824 = vmatmul.bf16.gmra.mxu0 %v488
      %v825 = vpop.f32.mrf.mxu0
      %v826 = vadd.f32 %v768, %v825
      %v827 = vpop.f32.mrf.mxu0
      %v828 = vadd.f32 %v770, %v827
      %829 = vmatmul.bf16.gmra.mxu0 %v491
      %v830 = vpop.f32.mrf.mxu0
      %v831 = vadd.f32 %v773, %v830
      %v832 = vpop.f32.mrf.mxu0
      %v833 = vadd.f32 %v775, %v832
      %834 = vmatmul.bf16.gmra.mxu0 %v494
      %v835 = vpop.f32.mrf.mxu0
      %v836 = vadd.f32 %v778, %v835
      %v837 = vpop.f32.mrf.mxu0
      %v838 = vadd.f32 %v780, %v837
      %839 = vmatmul.bf16.gmra.mxu0 %v497
      %v840 = vpop.f32.mrf.mxu0
      %v841 = vadd.f32 %v783, %v840
      %v842 = vpop.f32.mrf.mxu0
      %v843 = vadd.f32 %v785, %v842
      %844 = vmatmul.bf16.gmra.mxu0 %v500
      %v845 = vpop.f32.mrf.mxu0
      %v846 = vadd.f32 %v788, %v845
      %v847 = vpop.f32.mrf.mxu0
      %848 = vdwg.mxu0
      %v849 = vadd.f32 %v319, %v801
      %v850 = vadd.f32 %v320, %v803
      %v851 = vadd.f32 %v321, %v806
      %v852 = vadd.f32 %v322, %v808
      %v853 = vadd.f32 %v323, %v811
      %v854 = vadd.f32 %v324, %v813
      %v855 = vadd.f32 %v325, %v816
      %v856 = vadd.f32 %v326, %v818
      %v857 = vadd.f32 %v327, %v821
      %v858 = vadd.f32 %v328, %v823
      %v859 = vadd.f32 %v329, %v826
      %v860 = vadd.f32 %v330, %v828
      %v861 = vadd.f32 %v331, %v831
      %v862 = vadd.f32 %v332, %v833
      %v863 = vadd.f32 %v333, %v836
      %v864 = vadd.f32 %v334, %v838
      %v865 = vadd.f32 %v335, %v841
      %v866 = vadd.f32 %v336, %v843
      %v867 = vadd.f32 %v337, %v846
      %868 = vst [vmem:[#allocation2] sm:$0xff] %v849
      %869 = vst [vmem:[#allocation2 + $0x8] sm:$0xff] %v850
      %870 = vst [vmem:[#allocation2 + $0x10] sm:$0xff] %v851
      %871 = vst [vmem:[#allocation2 + $0x18] sm:$0xff] %v852
      %872 = vst [vmem:[#allocation2 + $0x20] sm:$0xff] %v853
      %873 = vst [vmem:[#allocation2 + $0x28] sm:$0xff] %v854
      %874 = vst [vmem:[#allocation2 + $0x30] sm:$0xff] %v855
      %875 = vst [vmem:[#allocation2 + $0x38] sm:$0xff] %v856
      %876 = vst [vmem:[#allocation2 + $0x40] sm:$0xff] %v857
      %877 = vst [vmem:[#allocation2 + $0x48] sm:$0xff] %v858
      %878 = vst [vmem:[#allocation2 + $0x50] sm:$0xff] %v859
      %879 = vst [vmem:[#allocation2 + $0x58] sm:$0xff] %v860
      %880 = vst [vmem:[#allocation2 + $0x60] sm:$0xff] %v861
      %881 = vst [vmem:[#allocation2 + $0x68] sm:$0xff] %v862
      %882 = vst [vmem:[#allocation2 + $0x70] sm:$0xff] %v863
      %883 = vst [vmem:[#allocation2 + $0x78] sm:$0xff] %v864
      %884 = vst [vmem:[#allocation2 + $0x80] sm:$0xff] %v865
      %885 = vst [vmem:[#allocation2 + $0x88] sm:$0xff] %v866
      %886 = vst [vmem:[#allocation2 + $0x90] sm:$0xff] %v867
      // Predicated region
      $region37: #{bgcn_encoder_forward.2} parent=31 // pred_check
        %p887 = pneg %p243
      $region38: #{bgcn_encoder_forward.2} parent=31 // pred_check_branch
        %889 = sbr.rel (%p887) target = $region40
      $region39: #{bgcn_encoder_forward.2} parent=31 // pred_region
        %v890 = vld [vmem:[%s2] sm:$0x1]
        %v891 = vtanh.pop %v890
        %v892 = vld [vmem:[#allocation2] sm:$0xff]
        %v893 = vld [vmem:[#allocation2 + $0x8] sm:$0xff]
        %v894 = vld [vmem:[#allocation2 + $0x10] sm:$0xff]
        %v895 = vld [vmem:[#allocation2 + $0x18] sm:$0xff]
        %v896 = vld [vmem:[#allocation2 + $0x20] sm:$0xff]
        %v897 = vld [vmem:[#allocation2 + $0x28] sm:$0xff]
        %v898 = vld [vmem:[#allocation2 + $0x30] sm:$0xff]
        %v899 = vld [vmem:[#allocation2 + $0x38] sm:$0xff]
        %v900 = vld [vmem:[#allocation2 + $0x40] sm:$0xff]
        %v901 = vld [vmem:[#allocation2 + $0x48] sm:$0xff]
        %v902 = vld [vmem:[#allocation2 + $0x50] sm:$0xff]
        %v903 = vld [vmem:[#allocation2 + $0x58] sm:$0xff]
        %v904 = vld [vmem:[#allocation2 + $0x60] sm:$0xff]
        %v905 = vld [vmem:[#allocation2 + $0x68] sm:$0xff]
        %v906 = vld [vmem:[#allocation2 + $0x70] sm:$0xff]
        %v907 = vld [vmem:[#allocation2 + $0x78] sm:$0xff]
        %v908 = vld [vmem:[#allocation2 + $0x80] sm:$0xff]
        %v909 = vld [vmem:[#allocation2 + $0x88] sm:$0xff]
        %v910 = vld [vmem:[#allocation2 + $0x90] sm:$0xff]
        %v912 = vperm.slane %v890, 0
        %v914 = vadd.f32 %v892, %v912
        %v915 = vadd.f32 %v893, %v912
        %v916 = vadd.f32 %v894, %v912
        %v917 = vadd.f32 %v895, %v912
        %v918 = vadd.f32 %v896, %v912
        %v919 = vadd.f32 %v897, %v912
        %v920 = vadd.f32 %v898, %v912
        %v921 = vadd.f32 %v899, %v912
        %v922 = vadd.f32 %v900, %v912
        %v923 = vadd.f32 %v901, %v912
        %v924 = vadd.f32 %v902, %v912
        %v925 = vadd.f32 %v903, %v912
        %v926 = vadd.f32 %v904, %v912
        %v927 = vadd.f32 %v905, %v912
        %v928 = vadd.f32 %v906, %v912
        %v929 = vadd.f32 %v907, %v912
        %v930 = vadd.f32 %v908, %v912
        %v931 = vadd.f32 %v909, %v912
        %v932 = vadd.f32 %v910, %v912
        %v933 = vtanh.pop %v914
        %v934 = vtanh.pop %v915
        %v935 = vtanh.pop %v916
        %v936 = vtanh.pop %v917
        %v937 = vtanh.pop %v918
        %v938 = vtanh.pop %v919
        %v939 = vtanh.pop %v920
        %v940 = vtanh.pop %v921
        %v941 = vtanh.pop %v922
        %v942 = vtanh.pop %v923
        %v943 = vtanh.pop %v924
        %v944 = vtanh.pop %v925
        %v945 = vtanh.pop %v926
        %v946 = vtanh.pop %v927
        %v947 = vtanh.pop %v928
        %v948 = vtanh.pop %v929
        %v949 = vtanh.pop %v930
        %v950 = vtanh.pop %v931
        %v951 = vtanh.pop %v932
        %952 = vst [vmem:[%s237] sm:$0xff] %v933
        %953 = vst [vmem:[%s237 + $0x8] sm:$0xff] %v934
        %954 = vst [vmem:[%s237 + $0x10] sm:$0xff] %v935
        %955 = vst [vmem:[%s237 + $0x18] sm:$0xff] %v936
        %956 = vst [vmem:[%s237 + $0x20] sm:$0xff] %v937
        %957 = vst [vmem:[%s237 + $0x28] sm:$0xff] %v938
        %958 = vst [vmem:[%s237 + $0x30] sm:$0xff] %v939
        %959 = vst [vmem:[%s237 + $0x38] sm:$0xff] %v940
        %960 = vst [vmem:[%s237 + $0x40] sm:$0xff] %v941
        %961 = vst [vmem:[%s237 + $0x48] sm:$0xff] %v942
        %962 = vst [vmem:[%s237 + $0x50] sm:$0xff] %v943
        %963 = vst [vmem:[%s237 + $0x58] sm:$0xff] %v944
        %964 = vst [vmem:[%s237 + $0x60] sm:$0xff] %v945
        %965 = vst [vmem:[%s237 + $0x68] sm:$0xff] %v946
        %966 = vst [vmem:[%s237 + $0x70] sm:$0xff] %v947
        %967 = vst [vmem:[%s237 + $0x78] sm:$0xff] %v948
        %968 = vst [vmem:[%s237 + $0x80] sm:$0xff] %v949
        %969 = vst [vmem:[%s237 + $0x88] sm:$0xff] %v950
        %970 = vst [vmem:[%s237 + $0x90] sm:$0xff] %v951
        %v972 = vperm.slane %v891, 0
        %v974 = vsub.f32 %v933, %v972
        %v975 = vsub.f32 %v934, %v972
        %v976 = vsub.f32 %v935, %v972
        %v977 = vsub.f32 %v936, %v972
        %v978 = vsub.f32 %v937, %v972
        %v979 = vsub.f32 %v938, %v972
        %v980 = vsub.f32 %v939, %v972
        %v981 = vsub.f32 %v940, %v972
        %v982 = vsub.f32 %v941, %v972
        %v983 = vsub.f32 %v942, %v972
        %v984 = vsub.f32 %v943, %v972
        %v985 = vsub.f32 %v944, %v972
        %v986 = vsub.f32 %v945, %v972
        %v987 = vsub.f32 %v946, %v972
        %v988 = vsub.f32 %v947, %v972
        %v989 = vsub.f32 %v948, %v972
        %v990 = vsub.f32 %v949, %v972
        %v991 = vsub.f32 %v950, %v972
        %v992 = vsub.f32 %v951, %v972
        %v993 = vlaneseq
        %v994 = vand.u32 %v993, 127
        %v995 = vadd.s32 %v994, 128
        %s996 = smul.u32 %s20, 152
        %v997 = vstv %s996
        %v998 = vadd.s32 %v994, %v997
        %v999 = vadd.s32 %v995, %v997
        %vm1000 = vcmp.lt.s32.totalorder %v998, 300
        %vm1001 = vcmp.lt.s32.totalorder %v999, 300
        %v1002 = vsel %vm1000, 1, 0
        %v1003 = vsel %vm1001, 1, 0
        %v1004 = vcvt.s32.f32 %v1002
        %v1005 = vcvt.s32.f32 %v1003
        %vm1006 = vcmask 195584
        %v1008 = vsel %vm1006, %v1005, 0
        %1010 = vmatpush.msra.mxu0 %v989
        %1011 = vmatpush.msra.mxu0 %v988
        %1012 = vmatpush.msra.mxu0 %v987
        %1013 = vmatpush.msra.mxu0 %v986
        %1014 = vmatpush.msra.mxu0 %v985
        %1015 = vmatpush.msra.mxu0 %v984
        %1016 = vmatpush.msra.mxu0 %v983
        %1017 = vmatpush.msra.mxu0 %v982
        %1018 = vmatpush.msra.mxu0 %v981
        %1019 = vmatpush.msra.mxu0 %v980
        %1020 = vmatpush.msra.mxu0 %v979
        %1021 = vmatpush.msra.mxu0 %v978
        %1022 = vmatpush.msra.mxu0 %v977
        %1023 = vmatpush.msra.mxu0 %v976
        %1024 = vmatpush.msra.mxu0 %v975
        %1025 = vmatpush.msra.mxu0 %v974
        %1026 = vmatmul.f32.gmra.mxu0 %v1004
        %v1027 = vpop.f32.mrf.mxu0
        %v1028 = vadd.f32 0.0, %v1027
        %1029 = vdwg.mxu0
        %1030 = vmatpush.msra.mxu0 0.0
        %1031 = vmatpush.msra.mxu0 0.0
        %1032 = vmatpush.msra.mxu0 0.0
        %1033 = vmatpush.msra.mxu0 0.0
        %1034 = vmatpush.msra.mxu0 0.0
        %1035 = vmatpush.msra.mxu0 0.0
        %1036 = vmatpush.msra.mxu0 0.0
        %1037 = vmatpush.msra.mxu0 0.0
        %1038 = vmatpush.msra.mxu0 0.0
        %1039 = vmatpush.msra.mxu0 0.0
        %1040 = vmatpush.msra.mxu0 0.0
        %1041 = vmatpush.msra.mxu0 0.0
        %1042 = vmatpush.msra.mxu0 0.0
        %1043 = vmatpush.msra.mxu0 %v992
        %1044 = vmatpush.msra.mxu0 %v991
        %1045 = vmatpush.msra.mxu0 %v990
        %1046 = vmatmul.f32.gmra.mxu0 %v1008
        %v1047 = vpop.f32.mrf.mxu0
        %v1048 = vadd.f32 %v1028, %v1047
        %1049 = vdwg.mxu0
        %1050 = vst [vmem:[%s242] sm:$0x1] %v1048
        %v1051 = vmul.f32 %v974, %v974
        %v1052 = vmul.f32 %v975, %v975
        %v1053 = vmul.f32 %v976, %v976
        %v1054 = vmul.f32 %v977, %v977
        %v1055 = vmul.f32 %v978, %v978
        %v1056 = vmul.f32 %v979, %v979
        %v1057 = vmul.f32 %v980, %v980
        %v1058 = vmul.f32 %v981, %v981
        %v1059 = vmul.f32 %v982, %v982
        %v1060 = vmul.f32 %v983, %v983
        %v1061 = vmul.f32 %v984, %v984
        %v1062 = vmul.f32 %v985, %v985
        %v1063 = vmul.f32 %v986, %v986
        %v1064 = vmul.f32 %v987, %v987
        %v1065 = vmul.f32 %v988, %v988
        %v1066 = vmul.f32 %v989, %v989
        %v1067 = vmul.f32 %v990, %v990
        %v1068 = vmul.f32 %v991, %v991
        %v1069 = vmul.f32 %v992, %v992
        %1070 = vmatpush.msra.mxu0 %v1066
        %1071 = vmatpush.msra.mxu0 %v1065
        %1072 = vmatpush.msra.mxu0 %v1064
        %1073 = vmatpush.msra.mxu0 %v1063
        %1074 = vmatpush.msra.mxu0 %v1062
        %1075 = vmatpush.msra.mxu0 %v1061
        %1076 = vmatpush.msra.mxu0 %v1060
        %1077 = vmatpush.msra.mxu0 %v1059
        %1078 = vmatpush.msra.mxu0 %v1058
        %1079 = vmatpush.msra.mxu0 %v1057
        %1080 = vmatpush.msra.mxu0 %v1056
        %1081 = vmatpush.msra.mxu0 %v1055
        %1082 = vmatpush.msra.mxu0 %v1054
        %1083 = vmatpush.msra.mxu0 %v1053
        %1084 = vmatpush.msra.mxu0 %v1052
        %1085 = vmatpush.msra.mxu0 %v1051
        %1086 = vmatmul.f32.gmra.mxu0 %v1004
        %v1087 = vpop.f32.mrf.mxu0
        %v1088 = vadd.f32 0.0, %v1087
        %1089 = vdwg.mxu0
        %1090 = vmatpush.msra.mxu0 0.0
        %1091 = vmatpush.msra.mxu0 0.0
        %1092 = vmatpush.msra.mxu0 0.0
        %1093 = vmatpush.msra.mxu0 0.0
        %1094 = vmatpush.msra.mxu0 0.0
        %1095 = vmatpush.msra.mxu0 0.0
        %1096 = vmatpush.msra.mxu0 0.0
        %1097 = vmatpush.msra.mxu0 0.0
        %1098 = vmatpush.msra.mxu0 0.0
        %1099 = vmatpush.msra.mxu0 0.0
        %1100 = vmatpush.msra.mxu0 0.0
        %1101 = vmatpush.msra.mxu0 0.0
        %1102 = vmatpush.msra.mxu0 0.0
        %1103 = vmatpush.msra.mxu0 %v1069
        %1104 = vmatpush.msra.mxu0 %v1068
        %1105 = vmatpush.msra.mxu0 %v1067
        %1106 = vmatmul.f32.gmra.mxu0 %v1008
        %v1107 = vpop.f32.mrf.mxu0
        %v1108 = vadd.f32 %v1088, %v1107
        %1109 = vdwg.mxu0
        %1110 = vst [vmem:[%s242 + $0x1] sm:$0x1] %v1108
      $region40: #{bgcn_encoder_forward.2} parent=31 // pred_fallthru
        _
      %s1111 = smul.u32 19, %s20
      %p1112 = scmp.lt.s32.totalorder %s1111, 37
      %s1113 = scalar_select %p1112, %s1111, 37
      %s1114 = smul.addr %s1113, 8
      %s1115 = scalar_lea.vmem %s3, %s1114
      %p1116 = scmp.lt.s32.totalorder %s20, 1
      %s1117 = scalar_select %p1116, %s20, 1
      %s1118 = smul.addr %s1117, 2
      %s1119 = scalar_lea.vmem %s4, %s1118
      // Predicated region
      $region41: #{bgcn_encoder_forward.2} parent=31 // pred_check
        %p1120 = pneg %p116
      $region42: #{bgcn_encoder_forward.2} parent=31 // pred_check_branch
        %1122 = sbr.rel (%p1120) target = $region44
      $region43: #{bgcn_encoder_forward.2} parent=31 // pred_region
        %s1123 = smul.u32 19, %s20
      $region44: #{bgcn_encoder_forward.2} parent=31 // pred_fallthru
        _
      // Predicated region
      $region45: #{bgcn_encoder_forward.2} parent=31 // pred_check
        %p1124 = pneg %p142
      $region46: #{bgcn_encoder_forward.2} parent=31 // pred_check_branch
        %1126 = sbr.rel (%p1124) target = $region48
      $region47: #{bgcn_encoder_forward.2} parent=31 // pred_region
        _
      $region48: #{bgcn_encoder_forward.2} parent=31 // pred_fallthru
        _
    $region32: #{bgcn_encoder_forward.2} parent=5 // pred_fallthru
      _
    %p1127 = scmp.le.s32.totalorder 2, %s11
    // Predicated region
    $region49: #{bgcn_encoder_forward.2} parent=5 // pred_check
      %p1128 = pneg %p1127
    $region50: #{bgcn_encoder_forward.2} parent=5 // pred_check_branch
      %1130 = sbr.rel (%p1128) target = $region52
    $region51: #{bgcn_encoder_forward.2} parent=5 // pred_region
      %s1131 = ssub.s32 %s11, 2
      // Predicated region
      $region53: #{bgcn_encoder_forward.2} parent=51 // pred_check
        %p1132 = pneg %p122
      $region54: #{bgcn_encoder_forward.2} parent=51 // pred_check_branch
        %1134 = sbr.rel (%p1132) target = $region56
      $region55: #{bgcn_encoder_forward.2} parent=51 // pred_region
        %s1135 = smul.u32 19, %s22
        %p1136 = scmp.lt.s32.totalorder %s1135, 37
        %s1137 = scalar_select %p1136, %s1135, 37
        %s1138 = smul.addr %s1137, 8
        %s1139 = scalar_lea.vmem %s3, %s1138
      $region56: #{bgcn_encoder_forward.2} parent=51 // pred_fallthru
        _
      // Predicated region
      $region57: #{bgcn_encoder_forward.2} parent=51 // pred_check
        %p1140 = pneg %p148
      $region58: #{bgcn_encoder_forward.2} parent=51 // pred_check_branch
        %1142 = sbr.rel (%p1140) target = $region60
      $region59: #{bgcn_encoder_forward.2} parent=51 // pred_region
        %p1143 = scmp.lt.s32.totalorder %s22, 1
        %s1144 = scalar_select %p1143, %s22, 1
        %s1145 = smul.addr %s1144, 2
        %s1146 = scalar_lea.vmem %s4, %s1145
      $region60: #{bgcn_encoder_forward.2} parent=51 // pred_fallthru
        _
    $region52: #{bgcn_encoder_forward.2} parent=5 // pred_fallthru
      _
  $region6: #{bgcn_encoder_forward.2} parent=0 // loop_footer
    %s15 = sadd.s32 1, %s11
  $region7: #{bgcn_encoder_forward.2} parent=0 // loop_footer_branch
    %10 = sbr.rel target = $region3
  $region8: #{bgcn_encoder_forward.2} parent=0 // loop_exit
    _

// kernel: bgcn_encoder_forward.3
$region0: #{bgcn_encoder_forward.3}
  #allocation0 [shape = 'u32[]', space=smem, size = 0x4, offset = 0x4, fixed_abs, tag = 'smem constant byte address 0x4 - core index']
  #allocation1 [shape = 'u32[72,128]{1,0:T(1,128)}', space=vmem, size = 0x9000, scoped, tag = 'internal scratch']
  %s0 = inlined_call_operand.vmem [shape: f32[304,128], index: 0, kind: input, shape index: {}, may-alias: {0,3}]
  %s1 = inlined_call_operand.vmem [shape: f32[1,128], index: 1, kind: input, shape index: {}]
  %s2 = inlined_call_operand.vmem [shape: f32[1,128], index: 2, kind: input, shape index: {}]
  %s3 = inlined_call_operand.vmem [shape: f32[304,128], index: 3, kind: output, shape index: {}, may-alias: {0,3}]
  %s4 = sld [smem:[#allocation0]]
  $region22: #{bgcn_encoder_forward.3} parent=0
    _
  %s6 = ssub.s32 1, %s4
  %s7 = scalar_select 0, %s6, %s4
  // Predicated region
  $region2: #{bgcn_encoder_forward.3} parent=0 // pred_check
    _
  $region3: #{bgcn_encoder_forward.3} parent=0 // pred_check_branch
    %9 = sbr.rel (0) target = $region5
  $region4: #{bgcn_encoder_forward.3} parent=0 // pred_region
    _
  $region5: #{bgcn_encoder_forward.3} parent=0 // pred_fallthru
    _
  // Predicated region
  $region6: #{bgcn_encoder_forward.3} parent=0 // pred_check
    _
  $region7: #{bgcn_encoder_forward.3} parent=0 // pred_check_branch
    %11 = sbr.rel (0) target = $region9
  $region8: #{bgcn_encoder_forward.3} parent=0 // pred_region
    _
  $region9: #{bgcn_encoder_forward.3} parent=0 // pred_fallthru
    _
  // Predicated region
  $region10: #{bgcn_encoder_forward.3} parent=0 // pred_check
    _
  $region11: #{bgcn_encoder_forward.3} parent=0 // pred_check_branch
    %13 = sbr.rel (0) target = $region13
  $region12: #{bgcn_encoder_forward.3} parent=0 // pred_region
    _
  $region13: #{bgcn_encoder_forward.3} parent=0 // pred_fallthru
    _
  %v14 = vld [vmem:[%s0] sm:$0xff]
  %v15 = vld [vmem:[%s0 + $0x8] sm:$0xff]
  %v16 = vld [vmem:[%s0 + $0x10] sm:$0xff]
  %v17 = vld [vmem:[%s0 + $0x18] sm:$0xff]
  %v18 = vld [vmem:[%s0 + $0x20] sm:$0xff]
  %v19 = vld [vmem:[%s0 + $0x28] sm:$0xff]
  %v20 = vld [vmem:[%s0 + $0x30] sm:$0xff]
  %v21 = vld [vmem:[%s0 + $0x38] sm:$0xff]
  %v22 = vld [vmem:[%s0 + $0x40] sm:$0xff]
  %v23 = vld [vmem:[%s0 + $0x48] sm:$0xff]
  %v24 = vld [vmem:[%s0 + $0x50] sm:$0xff]
  %v25 = vld [vmem:[%s0 + $0x58] sm:$0xff]
  %v26 = vld [vmem:[%s0 + $0x60] sm:$0xff]
  %v27 = vld [vmem:[%s0 + $0x68] sm:$0xff]
  %v28 = vld [vmem:[%s0 + $0x70] sm:$0xff]
  %v29 = vld [vmem:[%s0 + $0x78] sm:$0xff]
  %v30 = vld [vmem:[%s0 + $0x80] sm:$0xff]
  %v31 = vld [vmem:[%s0 + $0x88] sm:$0xff]
  %v32 = vld [vmem:[%s0 + $0x90] sm:$0xff]
  %v33 = vld [vmem:[%s0 + $0x98] sm:$0xff]
  %v34 = vld [vmem:[%s0 + $0xa0] sm:$0xff]
  %v35 = vld [vmem:[%s0 + $0xa8] sm:$0xff]
  %v36 = vld [vmem:[%s0 + $0xb0] sm:$0xff]
  %v37 = vld [vmem:[%s0 + $0xb8] sm:$0xff]
  %v38 = vld [vmem:[%s0 + $0xc0] sm:$0xff]
  %v39 = vld [vmem:[%s0 + $0xc8] sm:$0xff]
  %v40 = vld [vmem:[%s0 + $0xd0] sm:$0xff]
  %v41 = vld [vmem:[%s0 + $0xd8] sm:$0xff]
  %v42 = vld [vmem:[%s0 + $0xe0] sm:$0xff]
  %v43 = vld [vmem:[%s0 + $0xe8] sm:$0xff]
  %v44 = vld [vmem:[%s0 + $0xf0] sm:$0xff]
  %v45 = vld [vmem:[%s0 + $0xf8] sm:$0xff]
  %v46 = vld [vmem:[%s0 + $0x100] sm:$0xff]
  %v47 = vld [vmem:[%s0 + $0x108] sm:$0xff]
  %v48 = vld [vmem:[%s0 + $0x110] sm:$0xff]
  %v49 = vld [vmem:[%s0 + $0x118] sm:$0xff]
  %v50 = vld [vmem:[%s0 + $0x120] sm:$0xff]
  %v51 = vld [vmem:[%s0 + $0x128] sm:$0xff]
  %v52 = vld [vmem:[%s1] sm:$0x1]
  %v54 = vperm.slane %v52, 0
  %v56 = vmul.f32 %v14, %v54
  %v57 = vmul.f32 %v15, %v54
  %v58 = vmul.f32 %v16, %v54
  %v59 = vmul.f32 %v17, %v54
  %v60 = vmul.f32 %v18, %v54
  %v61 = vmul.f32 %v19, %v54
  %v62 = vmul.f32 %v20, %v54
  %v63 = vmul.f32 %v21, %v54
  %v64 = vmul.f32 %v22, %v54
  %v65 = vmul.f32 %v23, %v54
  %v66 = vmul.f32 %v24, %v54
  %v67 = vmul.f32 %v25, %v54
  %v68 = vmul.f32 %v26, %v54
  %v69 = vmul.f32 %v27, %v54
  %v70 = vmul.f32 %v28, %v54
  %v71 = vmul.f32 %v29, %v54
  %v72 = vmul.f32 %v30, %v54
  %v73 = vmul.f32 %v31, %v54
  %v74 = vmul.f32 %v32, %v54
  %v75 = vmul.f32 %v33, %v54
  %v76 = vmul.f32 %v34, %v54
  %v77 = vmul.f32 %v35, %v54
  %v78 = vmul.f32 %v36, %v54
  %v79 = vmul.f32 %v37, %v54
  %v80 = vmul.f32 %v38, %v54
  %v81 = vmul.f32 %v39, %v54
  %v82 = vmul.f32 %v40, %v54
  %v83 = vmul.f32 %v41, %v54
  %v84 = vmul.f32 %v42, %v54
  %v85 = vmul.f32 %v43, %v54
  %v86 = vmul.f32 %v44, %v54
  %v87 = vmul.f32 %v45, %v54
  %v88 = vmul.f32 %v46, %v54
  %v89 = vmul.f32 %v47, %v54
  %v90 = vmul.f32 %v48, %v54
  %v91 = vmul.f32 %v49, %v54
  %v92 = vmul.f32 %v50, %v54
  %v93 = vmul.f32 %v51, %v54
  %v94 = vld [vmem:[%s2] sm:$0x1]
  %v96 = vperm.slane %v94, 0
  %v98 = vadd.f32 %v56, %v96
  %v99 = vadd.f32 %v57, %v96
  %v100 = vadd.f32 %v58, %v96
  %v101 = vadd.f32 %v59, %v96
  %v102 = vadd.f32 %v60, %v96
  %v103 = vadd.f32 %v61, %v96
  %v104 = vadd.f32 %v62, %v96
  %v105 = vadd.f32 %v63, %v96
  %v106 = vadd.f32 %v64, %v96
  %v107 = vadd.f32 %v65, %v96
  %v108 = vadd.f32 %v66, %v96
  %v109 = vadd.f32 %v67, %v96
  %v110 = vadd.f32 %v68, %v96
  %v111 = vadd.f32 %v69, %v96
  %v112 = vadd.f32 %v70, %v96
  %v113 = vadd.f32 %v71, %v96
  %v114 = vadd.f32 %v72, %v96
  %v115 = vadd.f32 %v73, %v96
  %v116 = vadd.f32 %v74, %v96
  %v117 = vadd.f32 %v75, %v96
  %v118 = vadd.f32 %v76, %v96
  %v119 = vadd.f32 %v77, %v96
  %v120 = vadd.f32 %v78, %v96
  %v121 = vadd.f32 %v79, %v96
  %v122 = vadd.f32 %v80, %v96
  %v123 = vadd.f32 %v81, %v96
  %v124 = vadd.f32 %v82, %v96
  %v125 = vadd.f32 %v83, %v96
  %v126 = vadd.f32 %v84, %v96
  %v127 = vadd.f32 %v85, %v96
  %v128 = vadd.f32 %v86, %v96
  %v129 = vadd.f32 %v87, %v96
  %v130 = vadd.f32 %v88, %v96
  %v131 = vadd.f32 %v89, %v96
  %v132 = vadd.f32 %v90, %v96
  %v133 = vadd.f32 %v91, %v96
  %v134 = vadd.f32 %v92, %v96
  %v135 = vadd.f32 %v93, %v96
  %136 = vst [vmem:[%s3] sm:$0xff] %v98
  %137 = vst [vmem:[%s3 + $0x8] sm:$0xff] %v99
  %138 = vst [vmem:[%s3 + $0x10] sm:$0xff] %v100
  %139 = vst [vmem:[%s3 + $0x18] sm:$0xff] %v101
  %140 = vst [vmem:[%s3 + $0x20] sm:$0xff] %v102
  %141 = vst [vmem:[%s3 + $0x28] sm:$0xff] %v103
  %142 = vst [vmem:[%s3 + $0x30] sm:$0xff] %v104
  %143 = vst [vmem:[%s3 + $0x38] sm:$0xff] %v105
  %144 = vst [vmem:[%s3 + $0x40] sm:$0xff] %v106
  %145 = vst [vmem:[%s3 + $0x48] sm:$0xff] %v107
  %146 = vst [vmem:[%s3 + $0x50] sm:$0xff] %v108
  %147 = vst [vmem:[%s3 + $0x58] sm:$0xff] %v109
  %148 = vst [vmem:[%s3 + $0x60] sm:$0xff] %v110
  %149 = vst [vmem:[%s3 + $0x68] sm:$0xff] %v111
  %150 = vst [vmem:[%s3 + $0x70] sm:$0xff] %v112
  %151 = vst [vmem:[%s3 + $0x78] sm:$0xff] %v113
  %152 = vst [vmem:[%s3 + $0x80] sm:$0xff] %v114
  %153 = vst [vmem:[%s3 + $0x88] sm:$0xff] %v115
  %154 = vst [vmem:[%s3 + $0x90] sm:$0xff] %v116
  %155 = vst [vmem:[%s3 + $0x98] sm:$0xff] %v117
  %156 = vst [vmem:[%s3 + $0xa0] sm:$0xff] %v118
  %157 = vst [vmem:[%s3 + $0xa8] sm:$0xff] %v119
  %158 = vst [vmem:[%s3 + $0xb0] sm:$0xff] %v120
  %159 = vst [vmem:[%s3 + $0xb8] sm:$0xff] %v121
  %160 = vst [vmem:[%s3 + $0xc0] sm:$0xff] %v122
  %161 = vst [vmem:[%s3 + $0xc8] sm:$0xff] %v123
  %162 = vst [vmem:[%s3 + $0xd0] sm:$0xff] %v124
  %163 = vst [vmem:[%s3 + $0xd8] sm:$0xff] %v125
  %164 = vst [vmem:[%s3 + $0xe0] sm:$0xff] %v126
  %165 = vst [vmem:[%s3 + $0xe8] sm:$0xff] %v127
  %166 = vst [vmem:[%s3 + $0xf0] sm:$0xff] %v128
  %167 = vst [vmem:[%s3 + $0xf8] sm:$0xff] %v129
  %168 = vst [vmem:[%s3 + $0x100] sm:$0xff] %v130
  %169 = vst [vmem:[%s3 + $0x108] sm:$0xff] %v131
  %170 = vst [vmem:[%s3 + $0x110] sm:$0xff] %v132
  %171 = vst [vmem:[%s3 + $0x118] sm:$0xff] %v133
  %172 = vst [vmem:[%s3 + $0x120] sm:$0xff] %v134
  %173 = vst [vmem:[%s3 + $0x128] sm:$0xff] %v135
  // Predicated region
  $region14: #{bgcn_encoder_forward.3} parent=0 // pred_check
    _
  $region15: #{bgcn_encoder_forward.3} parent=0 // pred_check_branch
    %175 = sbr.rel (0) target = $region17
  $region16: #{bgcn_encoder_forward.3} parent=0 // pred_region
    _
  $region17: #{bgcn_encoder_forward.3} parent=0 // pred_fallthru
    _
  // Predicated region
  $region18: #{bgcn_encoder_forward.3} parent=0 // pred_check
    _
  $region19: #{bgcn_encoder_forward.3} parent=0 // pred_check_branch
    %177 = sbr.rel (0) target = $region21
  $region20: #{bgcn_encoder_forward.3} parent=0 // pred_region
    _
  $region21: #{bgcn_encoder_forward.3} parent=0 // pred_fallthru
    _

</llo_original>
